<compile_context>
chip_gen: v7x
topology: tpu7x:2x2x1
jax: 0.10.0
libtpu: 0.0.40
codegen_flags: <defaults>
</compile_context>

<pallas_src>
import jax
import jax.numpy as jnp
import numpy as np
from jax import lax
from jax.experimental import pallas as pl
from jax.experimental.pallas import tpu as pltpu

IN_CH = 3        # Conv1d in_channels
CONV_CH = 5      # Conv1d out_channels
CONV_K = 8       # Conv1d kernel_size; padding='same' -> pad 3 left, 4 right
HIDDEN = 64      # LSTM hidden size
MLP_H = 10       # first Linear out_features
MLP_PAD = 128    # lane-padded MLP hidden (zero pads -> numerically exact)
ROW_GRAN = 16    # batch-row granule (bf16 sublane packing => multiples of 16)
MAX_B_BLK = 128  # cap per perf review: (128,256) f32 gates temp = 32 vregs, no spills


def _round_up(v, m):
    return ((v + m - 1) // m) * m


def _choose_block(batch, T):
    """Pick the batch rows per grid step."""
    Bp = _round_up(max(batch, 1), ROW_GRAN)
    blk = min(MAX_B_BLK, Bp)
    # Ensure >=2 grid blocks when the batch allows it (v7x: 2 TensorCores share grid).
    if Bp > ROW_GRAN and (Bp + blk - 1) // blk < 2:
        blk = max(ROW_GRAN, _round_up((Bp + 1) // 2, ROW_GRAN))
    # Keep the per-block gate scratch (T*blk, 256) f32 within a modest VMEM budget
    # (covers v7x's smaller 64 MiB VMEM without chunking over T for typical winsize).
    while blk > ROW_GRAN and T * blk * 4 * HIDDEN * 4 > (24 << 20):
        blk -= ROW_GRAN
    return blk


def cnnlstm_kernel(xc_ref, wf_ref, bf_ref, whh_ref, w1_ref, b1_ref, w2_ref, b2_ref,
                   out_ref, gates_s):
    Bb = out_ref.shape[0]                   # batch rows in this block
    TB = xc_ref.shape[0]                    # T * Bb
    T = TB // Bb

    # ---- folded Conv1d + LSTM input projection: ONE bf16 MXU matmul for all t ----
    gates_s[...] = (jnp.dot(xc_ref[...], wf_ref[...],
                            preferred_element_type=jnp.float32)
                    + bf_ref[...])                                   # (T*Bb, 256) f32

    # ---- LSTM recurrence, h0 = c0 = 0, state carried in registers ----
    whh = whh_ref[...]                                               # (64, 256) bf16, cols [i|f|o|g]
    h = jnp.zeros((Bb, HIDDEN), jnp.float32)
    c = jnp.zeros((Bb, HIDDEN), jnp.float32)

    def cell(g_in, h, c):
        gates = g_in + jnp.dot(h.astype(jnp.bfloat16), whh,
                               preferred_element_type=jnp.float32)   # (Bb, 256)
        sig = 0.5 * jnp.tanh(0.5 * gates[:, :3 * HIDDEN]) + 0.5      # sigmoid via one tanh
        i_g = sig[:, 0 * HIDDEN:1 * HIDDEN]
        f_g = sig[:, 1 * HIDDEN:2 * HIDDEN]
        o_g = sig[:, 2 * HIDDEN:3 * HIDDEN]
        g_g = jnp.tanh(gates[:, 3 * HIDDEN:])
        c = f_g * c + i_g * g_g
        h = o_g * jnp.tanh(c)
        return h, c

    if T <= 32:
        # small static T -> full unroll (LLO scheduler sees the whole serial chain)
        for t in range(T):
            h, c = cell(gates_s[t * Bb:(t + 1) * Bb, :], h, c)
    else:
        # large T -> bounded-unroll fori_loop keeps code size / live ranges in check
        def body(t, carry):
            h, c = carry
            g_in = gates_s[pl.ds(pl.multiple_of(t * Bb, 8), Bb), :]
            return cell(g_in, h, c)
        h, c = lax.fori_loop(0, T, body, (h, c), unroll=8)

    # ---- relu(h_T) -> Linear(64,10) -> ReLU -> Linear(10,1), lane-padded to 128 ----
    feat = jnp.maximum(h, 0.0)
    z1 = jnp.maximum(
        jnp.dot(feat, w1_ref[...], preferred_element_type=jnp.float32) + b1_ref[...],
        0.0)                                                          # (Bb, 128)
    out_ref[...] = (jnp.dot(z1, w2_ref[...], preferred_element_type=jnp.float32)
                    + b2_ref[...])                                    # (Bb, 1)


def cnnlstm_forward(x, kp):
    """x: (B, 3, winsize) float32 — matches x.view(-1, 3, winsize) in the PyTorch forward."""
    B, C, T = x.shape
    assert C == IN_CH
    x = x.astype(jnp.float32)

    blk = _choose_block(B, T)
    Bp = _round_up(B, blk)
    nblk = Bp // blk
    if Bp != B:
        x = jnp.pad(x, ((0, Bp - B), (0, 0), (0, 0)))

    # NCW -> time-major (T, Bp, 3) + PyTorch 'same' padding for k=8: (3 left, 4 right).
    xt = jnp.transpose(x, (2, 0, 1))
    xtp = jnp.pad(xt, ((3, 4), (0, 0), (0, 0)))                       # (T+7, Bp, 3)
    # im2col (layout plumbing in the wrapper): column j*3 + c == xpad[t+j, b, c].
    xcols = jnp.concatenate([xtp[j:j + T] for j in range(CONV_K)], axis=-1)  # (T, Bp, 24)
    xcols = (xcols.reshape(T, nblk, blk, CONV_K * IN_CH)
                  .transpose(1, 0, 2, 3)
                  .reshape(nblk * T * blk, CONV_K * IN_CH)
                  .astype(jnp.bfloat16))                              # (nblk*T*blk, 24) bf16

    inputs = (xcols, kp["w_fold"], kp["b_fold"], kp["whh"],
              kp["w1"], kp["b1"], kp["w2"], kp["b2"])

    def full_spec(a):
        nd = a.ndim
        return pl.BlockSpec(a.shape, lambda i, _nd=nd: (0,) * _nd)

    in_specs = ([pl.BlockSpec((T * blk, CONV_K * IN_CH), lambda i: (i, 0))]
                + [full_spec(a) for a in inputs[1:]])

    # Rough VMEM footprint; raise the scoped limit only if the defaults would be tight.
    gates_bytes = T * blk * 4 * HIDDEN * 4
    xc_bytes = T * blk * CONV_K * IN_CH * 2
    est = gates_bytes + 2 * xc_bytes + (2 << 20)
    vmem_limit = int(min(max(2 * est, 32 << 20), 96 << 20)) if est > (12 << 20) else None

    grid_spec = pltpu.PrefetchScalarGridSpec(
        num_scalar_prefetch=0,
        grid=(nblk,),
        in_specs=in_specs,
        out_specs=pl.BlockSpec((blk, 1), lambda i: (i, 0)),
        scratch_shapes=[
            pltpu.VMEM((T * blk, 4 * HIDDEN), jnp.float32),           # per-step input gates
        ],
    )

    out = pl.pallas_call(
        cnnlstm_kernel,
        out_shape=jax.ShapeDtypeStruct((Bp, 1), jnp.float32),
        grid_spec=grid_spec,
        compiler_params=pltpu.CompilerParams(
            dimension_semantics=("parallel",),
            vmem_limit_bytes=vmem_limit),
    )(*inputs)
    return out[:B]


def init_raw_params(key):
    """Deterministic synthetic parameters in the PyTorch module's native layouts."""
    ks = jax.random.split(key, 8)
    s = 0.1
    return dict(
        conv_w=jax.random.normal(ks[0], (CONV_CH, IN_CH, CONV_K), jnp.float32) * s,  # (5,3,8)
        conv_b=jax.random.normal(ks[1], (CONV_CH,), jnp.float32) * s,                # (5,)
        w_ih=jax.random.normal(ks[2], (4 * HIDDEN, CONV_CH), jnp.float32) * s,       # (256,5) [i,f,g,o]
        w_hh=jax.random.normal(ks[3], (4 * HIDDEN, HIDDEN), jnp.float32) * s,        # (256,64)
        w1=jax.random.normal(ks[4], (MLP_H, HIDDEN), jnp.float32) * s,               # (10,64)
        b1=jax.random.normal(ks[5], (MLP_H,), jnp.float32) * s,                      # (10,)
        w2=jax.random.normal(ks[6], (1, MLP_H), jnp.float32) * s,                    # (1,10)
        b2=jax.random.normal(ks[7], (1,), jnp.float32) * s,                          # (1,)
    )


def fold_params(raw):
    """Pre-transpose / fold torch-layout weights into the layouts the kernel consumes."""
    # Reorder gate columns from torch's [i|f|g|o] to [i|f|o|g].
    perm = np.concatenate([np.arange(0, HIDDEN),                 # i
                           np.arange(HIDDEN, 2 * HIDDEN),        # f
                           np.arange(3 * HIDDEN, 4 * HIDDEN),    # o
                           np.arange(2 * HIDDEN, 3 * HIDDEN)])   # g
    wih = raw["w_ih"].T[:, perm]                                 # (5, 256)
    whh = raw["w_hh"].T[:, perm]                                 # (64, 256)
    # Conv weights in im2col row order: row j*3 + c  (tap-major, channel-minor).
    wc_flat = jnp.transpose(raw["conv_w"], (2, 1, 0)).reshape(CONV_K * IN_CH, CONV_CH)  # (24, 5)
    # Lane-pad the MLP head to 128; pads are zero so the result is exact.
    w1p = jnp.zeros((HIDDEN, MLP_PAD), jnp.float32).at[:, :MLP_H].set(raw["w1"].T)
    b1p = jnp.zeros((1, MLP_PAD), jnp.float32).at[0, :MLP_H].set(raw["b1"])
    w2p = jnp.zeros((MLP_PAD, 1), jnp.float32).at[:MLP_H, :].set(raw["w2"].T)
    return dict(
        w_fold=(wc_flat @ wih).astype(jnp.bfloat16),             # (24, 256) bf16
        b_fold=raw["conv_b"].reshape(1, CONV_CH) @ wih,          # (1, 256)  f32
        whh=whh.astype(jnp.bfloat16),                            # (64, 256) bf16
        w1=w1p,                                                  # (64, 128)
        b1=b1p,                                                  # (1, 128)
        w2=w2p,                                                  # (128, 1)
        b2=raw["b2"].reshape(1, 1),                              # (1, 1)
    )


def reference_forward(x, p):
    """Pure-JAX f32 reference mirroring the PyTorch forward exactly (torch layouts, [i,f,g,o])."""
    B, _, T = x.shape
    xpad = jnp.pad(x.astype(jnp.float32), ((0, 0), (0, 0), (3, 4)))          # (B, 3, T+7)
    conv = jnp.zeros((B, CONV_CH, T), jnp.float32)
    for j in range(CONV_K):
        conv = conv + jnp.einsum("bct,oc->bot", xpad[:, :, j:j + T], p["conv_w"][:, :, j])
    conv = conv + p["conv_b"][None, :, None]
    seq = jnp.transpose(conv, (0, 2, 1))                                     # (B, T, 5)
    h = jnp.zeros((B, HIDDEN), jnp.float32)
    c = jnp.zeros((B, HIDDEN), jnp.float32)
    for t in range(T):
        gates = seq[:, t, :] @ p["w_ih"].T + h @ p["w_hh"].T                 # (B, 256)
        i = jax.nn.sigmoid(gates[:, 0 * HIDDEN:1 * HIDDEN])
        f = jax.nn.sigmoid(gates[:, 1 * HIDDEN:2 * HIDDEN])
        g = jnp.tanh(gates[:, 2 * HIDDEN:3 * HIDDEN])
        o = jax.nn.sigmoid(gates[:, 3 * HIDDEN:4 * HIDDEN])
        c = f * c + i * g
        h = o * jnp.tanh(c)
    feat = jnp.maximum(h, 0.0)
    z1 = jnp.maximum(feat @ p["w1"].T + p["b1"], 0.0)
    return z1 @ p["w2"].T + p["b2"]


if __name__ == "__main__":
    key = jax.random.PRNGKey(0)
    kx, kp = jax.random.split(key)
    B, winsize = 2, 16
    x = jax.random.normal(kx, (B, IN_CH, winsize), jnp.float32)

    raw = init_raw_params(kp)
    kparams = fold_params(raw)

    out = jax.block_until_ready(cnnlstm_forward(x, kparams))
    ref = jax.block_until_ready(reference_forward(x, raw))

    assert out.shape == (B, 1), out.shape
    # bf16 MXU operands (folded projection + recurrence) vs. the f32 reference:
    # tolerance loosened per perf review.
    np.testing.assert_allclose(np.asarray(out), np.asarray(ref), atol=2e-2, rtol=2e-2)
    print("KERNEL_OK")
</pallas_src>

<mosaic_0001>
module attributes {stable_mosaic.version = 11 : i64} {
  func.func @cnnlstm_kernel(%arg0: i32, %arg1: memref<256x24xbf16, #tpu.memory_space<vmem>>, %arg2: memref<24x256xbf16, #tpu.memory_space<vmem>>, %arg3: memref<1x256xf32, #tpu.memory_space<vmem>>, %arg4: memref<64x256xbf16, #tpu.memory_space<vmem>>, %arg5: memref<64x128xf32, #tpu.memory_space<vmem>>, %arg6: memref<1x128xf32, #tpu.memory_space<vmem>>, %arg7: memref<128x1xf32, #tpu.memory_space<vmem>>, %arg8: memref<1x1xf32, #tpu.memory_space<vmem>>, %arg9: memref<16x1xf32, #tpu.memory_space<vmem>>, %arg10: memref<256x256xf32, #tpu.memory_space<vmem>>) attributes {dimension_semantics = [#tpu.dimension_semantics<parallel>], iteration_bounds = array<i64: 1>, scalar_prefetch = 0 : i64, scratch_operands = 1 : i64, tpu.core_type = #tpu.core_type<tc>, window_params = [{transform_indices = @transform_0, window_bounds = array<i64: 256, 24>}, {pipeline_mode = #tpu.pipeline_mode<synchronous>, transform_indices = @transform_1, window_bounds = array<i64: 24, 256>}, {pipeline_mode = #tpu.pipeline_mode<synchronous>, transform_indices = @transform_2, window_bounds = array<i64: 1, 256>}, {pipeline_mode = #tpu.pipeline_mode<synchronous>, transform_indices = @transform_3, window_bounds = array<i64: 64, 256>}, {pipeline_mode = #tpu.pipeline_mode<synchronous>, transform_indices = @transform_4, window_bounds = array<i64: 64, 128>}, {pipeline_mode = #tpu.pipeline_mode<synchronous>, transform_indices = @transform_5, window_bounds = array<i64: 1, 128>}, {pipeline_mode = #tpu.pipeline_mode<synchronous>, transform_indices = @transform_6, window_bounds = array<i64: 128, 1>}, {pipeline_mode = #tpu.pipeline_mode<synchronous>, transform_indices = @transform_7, window_bounds = array<i64: 1, 1>}, {transform_indices = @transform_8, window_bounds = array<i64: 16, 1>}]} {
    %c0 = arith.constant 0 : index
    %c0_0 = arith.constant 0 : index
    %0 = vector.load %arg1[%c0, %c0_0] : memref<256x24xbf16, #tpu.memory_space<vmem>>, vector<256x24xbf16>
    %c0_1 = arith.constant 0 : index
    %c0_2 = arith.constant 0 : index
    %1 = vector.load %arg2[%c0_1, %c0_2] : memref<24x256xbf16, #tpu.memory_space<vmem>>, vector<24x256xbf16>
    %cst = arith.constant dense<0.000000e+00> : vector<256x256xf32>
    %2 = tpu.matmul %0, %1, %cst {dimension_numbers = #tpu.dot_dimension_numbers<[1], [0], [0], [1], [0, 0, 1, 1], [], []>} : vector<256x24xbf16>, vector<24x256xbf16>, vector<256x256xf32> -> vector<256x256xf32>
    %c0_3 = arith.constant 0 : index
    %c0_4 = arith.constant 0 : index
    %3 = vector.load %arg3[%c0_3, %c0_4] : memref<1x256xf32, #tpu.memory_space<vmem>>, vector<1x256xf32>
    %4 = vector.broadcast %3 : vector<1x256xf32> to vector<256x256xf32>
    %5 = arith.addf %2, %4 : vector<256x256xf32>
    %c0_5 = arith.constant 0 : index
    %c0_6 = arith.constant 0 : index
    %6 = vector.load %arg10[%c0_5, %c0_6] : memref<256x256xf32, #tpu.memory_space<vmem>>, vector<256x256xf32>
    tpu.vector_store %arg10[%c0_5, %c0_6], %5 {strides = array<i32>} : memref<256x256xf32, #tpu.memory_space<vmem>>, vector<256x256xf32>,
    %c0_7 = arith.constant 0 : index
    %c0_8 = arith.constant 0 : index
    %7 = vector.load %arg4[%c0_7, %c0_8] : memref<64x256xbf16, #tpu.memory_space<vmem>>, vector<64x256xbf16>
    %cst_9 = arith.constant 0.000000e+00 : f32
    %8 = vector.broadcast %cst_9 : f32 to vector<16x64xf32>
    %cst_10 = arith.constant 0.000000e+00 : f32
    %9 = vector.broadcast %cst_10 : f32 to vector<16x64xf32>
    %c0_11 = arith.constant 0 : index
    %c0_12 = arith.constant 0 : index
    %10 = vector.load %arg10[%c0_11, %c0_12] : memref<256x256xf32, #tpu.memory_space<vmem>>, vector<16x256xf32>
    %11 = arith.truncf %8 : vector<16x64xf32> to vector<16x64xbf16>
    %cst_13 = arith.constant dense<0.000000e+00> : vector<16x256xf32>
    %12 = tpu.matmul %11, %7, %cst_13 {dimension_numbers = #tpu.dot_dimension_numbers<[1], [0], [0], [1], [0, 0, 1, 1], [], []>} : vector<16x64xbf16>, vector<64x256xbf16>, vector<16x256xf32> -> vector<16x256xf32>
    %13 = arith.addf %10, %12 : vector<16x256xf32>
    %14 = vector.extract_strided_slice %13 {offsets = [0, 0], sizes = [16, 192], strides = [1, 1]} : vector<16x256xf32> to vector<16x192xf32>
    %cst_14 = arith.constant 5.000000e-01 : f32
    %15 = vector.broadcast %cst_14 : f32 to vector<16x192xf32>
    %16 = arith.mulf %15, %14 : vector<16x192xf32>
    %17 = math.tanh %16 : vector<16x192xf32>
    %cst_15 = arith.constant 5.000000e-01 : f32
    %18 = vector.broadcast %cst_15 : f32 to vector<16x192xf32>
    %19 = arith.mulf %18, %17 : vector<16x192xf32>
    %cst_16 = arith.constant 5.000000e-01 : f32
    %20 = vector.broadcast %cst_16 : f32 to vector<16x192xf32>
    %21 = arith.addf %19, %20 : vector<16x192xf32>
    %22 = vector.extract_strided_slice %21 {offsets = [0, 0], sizes = [16, 64], strides = [1, 1]} : vector<16x192xf32> to vector<16x64xf32>
    %23 = vector.extract_strided_slice %21 {offsets = [0, 64], sizes = [16, 64], strides = [1, 1]} : vector<16x192xf32> to vector<16x64xf32>
    %24 = vector.extract_strided_slice %21 {offsets = [0, 128], sizes = [16, 64], strides = [1, 1]} : vector<16x192xf32> to vector<16x64xf32>
    %25 = vector.extract_strided_slice %13 {offsets = [0, 192], sizes = [16, 64], strides = [1, 1]} : vector<16x256xf32> to vector<16x64xf32>
    %26 = math.tanh %25 : vector<16x64xf32>
    %27 = arith.mulf %23, %9 : vector<16x64xf32>
    %28 = arith.mulf %22, %26 : vector<16x64xf32>
    %29 = arith.addf %27, %28 : vector<16x64xf32>
    %30 = math.tanh %29 : vector<16x64xf32>
    %31 = arith.mulf %24, %30 : vector<16x64xf32>
    %c16 = arith.constant 16 : index
    %c0_17 = arith.constant 0 : index
    %32 = vector.load %arg10[%c16, %c0_17] : memref<256x256xf32, #tpu.memory_space<vmem>>, vector<16x256xf32>
    %33 = arith.truncf %31 : vector<16x64xf32> to vector<16x64xbf16>
    %cst_18 = arith.constant dense<0.000000e+00> : vector<16x256xf32>
    %34 = tpu.matmul %33, %7, %cst_18 {dimension_numbers = #tpu.dot_dimension_numbers<[1], [0], [0], [1], [0, 0, 1, 1], [], []>} : vector<16x64xbf16>, vector<64x256xbf16>, vector<16x256xf32> -> vector<16x256xf32>
    %35 = arith.addf %32, %34 : vector<16x256xf32>
    %36 = vector.extract_strided_slice %35 {offsets = [0, 0], sizes = [16, 192], strides = [1, 1]} : vector<16x256xf32> to vector<16x192xf32>
    %cst_19 = arith.constant 5.000000e-01 : f32
    %37 = vector.broadcast %cst_19 : f32 to vector<16x192xf32>
    %38 = arith.mulf %37, %36 : vector<16x192xf32>
    %39 = math.tanh %38 : vector<16x192xf32>
    %cst_20 = arith.constant 5.000000e-01 : f32
    %40 = vector.broadcast %cst_20 : f32 to vector<16x192xf32>
    %41 = arith.mulf %40, %39 : vector<16x192xf32>
    %cst_21 = arith.constant 5.000000e-01 : f32
    %42 = vector.broadcast %cst_21 : f32 to vector<16x192xf32>
    %43 = arith.addf %41, %42 : vector<16x192xf32>
    %44 = vector.extract_strided_slice %43 {offsets = [0, 0], sizes = [16, 64], strides = [1, 1]} : vector<16x192xf32> to vector<16x64xf32>
    %45 = vector.extract_strided_slice %43 {offsets = [0, 64], sizes = [16, 64], strides = [1, 1]} : vector<16x192xf32> to vector<16x64xf32>
    %46 = vector.extract_strided_slice %43 {offsets = [0, 128], sizes = [16, 64], strides = [1, 1]} : vector<16x192xf32> to vector<16x64xf32>
    %47 = vector.extract_strided_slice %35 {offsets = [0, 192], sizes = [16, 64], strides = [1, 1]} : vector<16x256xf32> to vector<16x64xf32>
    %48 = math.tanh %47 : vector<16x64xf32>
    %49 = arith.mulf %45, %29 : vector<16x64xf32>
    %50 = arith.mulf %44, %48 : vector<16x64xf32>
    %51 = arith.addf %49, %50 : vector<16x64xf32>
    %52 = math.tanh %51 : vector<16x64xf32>
    %53 = arith.mulf %46, %52 : vector<16x64xf32>
    %c32 = arith.constant 32 : index
    %c0_22 = arith.constant 0 : index
    %54 = vector.load %arg10[%c32, %c0_22] : memref<256x256xf32, #tpu.memory_space<vmem>>, vector<16x256xf32>
    %55 = arith.truncf %53 : vector<16x64xf32> to vector<16x64xbf16>
    %cst_23 = arith.constant dense<0.000000e+00> : vector<16x256xf32>
    %56 = tpu.matmul %55, %7, %cst_23 {dimension_numbers = #tpu.dot_dimension_numbers<[1], [0], [0], [1], [0, 0, 1, 1], [], []>} : vector<16x64xbf16>, vector<64x256xbf16>, vector<16x256xf32> -> vector<16x256xf32>
    %57 = arith.addf %54, %56 : vector<16x256xf32>
    %58 = vector.extract_strided_slice %57 {offsets = [0, 0], sizes = [16, 192], strides = [1, 1]} : vector<16x256xf32> to vector<16x192xf32>
    %cst_24 = arith.constant 5.000000e-01 : f32
    %59 = vector.broadcast %cst_24 : f32 to vector<16x192xf32>
    %60 = arith.mulf %59, %58 : vector<16x192xf32>
    %61 = math.tanh %60 : vector<16x192xf32>
    %cst_25 = arith.constant 5.000000e-01 : f32
    %62 = vector.broadcast %cst_25 : f32 to vector<16x192xf32>
    %63 = arith.mulf %62, %61 : vector<16x192xf32>
    %cst_26 = arith.constant 5.000000e-01 : f32
    %64 = vector.broadcast %cst_26 : f32 to vector<16x192xf32>
    %65 = arith.addf %63, %64 : vector<16x192xf32>
    %66 = vector.extract_strided_slice %65 {offsets = [0, 0], sizes = [16, 64], strides = [1, 1]} : vector<16x192xf32> to vector<16x64xf32>
    %67 = vector.extract_strided_slice %65 {offsets = [0, 64], sizes = [16, 64], strides = [1, 1]} : vector<16x192xf32> to vector<16x64xf32>
    %68 = vector.extract_strided_slice %65 {offsets = [0, 128], sizes = [16, 64], strides = [1, 1]} : vector<16x192xf32> to vector<16x64xf32>
    %69 = vector.extract_strided_slice %57 {offsets = [0, 192], sizes = [16, 64], strides = [1, 1]} : vector<16x256xf32> to vector<16x64xf32>
    %70 = math.tanh %69 : vector<16x64xf32>
    %71 = arith.mulf %67, %51 : vector<16x64xf32>
    %72 = arith.mulf %66, %70 : vector<16x64xf32>
    %73 = arith.addf %71, %72 : vector<16x64xf32>
    %74 = math.tanh %73 : vector<16x64xf32>
    %75 = arith.mulf %68, %74 : vector<16x64xf32>
    %c48 = arith.constant 48 : index
    %c0_27 = arith.constant 0 : index
    %76 = vector.load %arg10[%c48, %c0_27] : memref<256x256xf32, #tpu.memory_space<vmem>>, vector<16x256xf32>
    %77 = arith.truncf %75 : vector<16x64xf32> to vector<16x64xbf16>
    %cst_28 = arith.constant dense<0.000000e+00> : vector<16x256xf32>
    %78 = tpu.matmul %77, %7, %cst_28 {dimension_numbers = #tpu.dot_dimension_numbers<[1], [0], [0], [1], [0, 0, 1, 1], [], []>} : vector<16x64xbf16>, vector<64x256xbf16>, vector<16x256xf32> -> vector<16x256xf32>
    %79 = arith.addf %76, %78 : vector<16x256xf32>
    %80 = vector.extract_strided_slice %79 {offsets = [0, 0], sizes = [16, 192], strides = [1, 1]} : vector<16x256xf32> to vector<16x192xf32>
    %cst_29 = arith.constant 5.000000e-01 : f32
    %81 = vector.broadcast %cst_29 : f32 to vector<16x192xf32>
    %82 = arith.mulf %81, %80 : vector<16x192xf32>
    %83 = math.tanh %82 : vector<16x192xf32>
    %cst_30 = arith.constant 5.000000e-01 : f32
    %84 = vector.broadcast %cst_30 : f32 to vector<16x192xf32>
    %85 = arith.mulf %84, %83 : vector<16x192xf32>
    %cst_31 = arith.constant 5.000000e-01 : f32
    %86 = vector.broadcast %cst_31 : f32 to vector<16x192xf32>
    %87 = arith.addf %85, %86 : vector<16x192xf32>
    %88 = vector.extract_strided_slice %87 {offsets = [0, 0], sizes = [16, 64], strides = [1, 1]} : vector<16x192xf32> to vector<16x64xf32>
    %89 = vector.extract_strided_slice %87 {offsets = [0, 64], sizes = [16, 64], strides = [1, 1]} : vector<16x192xf32> to vector<16x64xf32>
    %90 = vector.extract_strided_slice %87 {offsets = [0, 128], sizes = [16, 64], strides = [1, 1]} : vector<16x192xf32> to vector<16x64xf32>
    %91 = vector.extract_strided_slice %79 {offsets = [0, 192], sizes = [16, 64], strides = [1, 1]} : vector<16x256xf32> to vector<16x64xf32>
    %92 = math.tanh %91 : vector<16x64xf32>
    %93 = arith.mulf %89, %73 : vector<16x64xf32>
    %94 = arith.mulf %88, %92 : vector<16x64xf32>
    %95 = arith.addf %93, %94 : vector<16x64xf32>
    %96 = math.tanh %95 : vector<16x64xf32>
    %97 = arith.mulf %90, %96 : vector<16x64xf32>
    %c64 = arith.constant 64 : index
    %c0_32 = arith.constant 0 : index
    %98 = vector.load %arg10[%c64, %c0_32] : memref<256x256xf32, #tpu.memory_space<vmem>>, vector<16x256xf32>
    %99 = arith.truncf %97 : vector<16x64xf32> to vector<16x64xbf16>
    %cst_33 = arith.constant dense<0.000000e+00> : vector<16x256xf32>
    %100 = tpu.matmul %99, %7, %cst_33 {dimension_numbers = #tpu.dot_dimension_numbers<[1], [0], [0], [1], [0, 0, 1, 1], [], []>} : vector<16x64xbf16>, vector<64x256xbf16>, vector<16x256xf32> -> vector<16x256xf32>
    %101 = arith.addf %98, %100 : vector<16x256xf32>
    %102 = vector.extract_strided_slice %101 {offsets = [0, 0], sizes = [16, 192], strides = [1, 1]} : vector<16x256xf32> to vector<16x192xf32>
    %cst_34 = arith.constant 5.000000e-01 : f32
    %103 = vector.broadcast %cst_34 : f32 to vector<16x192xf32>
    %104 = arith.mulf %103, %102 : vector<16x192xf32>
    %105 = math.tanh %104 : vector<16x192xf32>
    %cst_35 = arith.constant 5.000000e-01 : f32
    %106 = vector.broadcast %cst_35 : f32 to vector<16x192xf32>
    %107 = arith.mulf %106, %105 : vector<16x192xf32>
    %cst_36 = arith.constant 5.000000e-01 : f32
    %108 = vector.broadcast %cst_36 : f32 to vector<16x192xf32>
    %109 = arith.addf %107, %108 : vector<16x192xf32>
    %110 = vector.extract_strided_slice %109 {offsets = [0, 0], sizes = [16, 64], strides = [1, 1]} : vector<16x192xf32> to vector<16x64xf32>
    %111 = vector.extract_strided_slice %109 {offsets = [0, 64], sizes = [16, 64], strides = [1, 1]} : vector<16x192xf32> to vector<16x64xf32>
    %112 = vector.extract_strided_slice %109 {offsets = [0, 128], sizes = [16, 64], strides = [1, 1]} : vector<16x192xf32> to vector<16x64xf32>
    %113 = vector.extract_strided_slice %101 {offsets = [0, 192], sizes = [16, 64], strides = [1, 1]} : vector<16x256xf32> to vector<16x64xf32>
    %114 = math.tanh %113 : vector<16x64xf32>
    %115 = arith.mulf %111, %95 : vector<16x64xf32>
    %116 = arith.mulf %110, %114 : vector<16x64xf32>
    %117 = arith.addf %115, %116 : vector<16x64xf32>
    %118 = math.tanh %117 : vector<16x64xf32>
    %119 = arith.mulf %112, %118 : vector<16x64xf32>
    %c80 = arith.constant 80 : index
    %c0_37 = arith.constant 0 : index
    %120 = vector.load %arg10[%c80, %c0_37] : memref<256x256xf32, #tpu.memory_space<vmem>>, vector<16x256xf32>
    %121 = arith.truncf %119 : vector<16x64xf32> to vector<16x64xbf16>
    %cst_38 = arith.constant dense<0.000000e+00> : vector<16x256xf32>
    %122 = tpu.matmul %121, %7, %cst_38 {dimension_numbers = #tpu.dot_dimension_numbers<[1], [0], [0], [1], [0, 0, 1, 1], [], []>} : vector<16x64xbf16>, vector<64x256xbf16>, vector<16x256xf32> -> vector<16x256xf32>
    %123 = arith.addf %120, %122 : vector<16x256xf32>
    %124 = vector.extract_strided_slice %123 {offsets = [0, 0], sizes = [16, 192], strides = [1, 1]} : vector<16x256xf32> to vector<16x192xf32>
    %cst_39 = arith.constant 5.000000e-01 : f32
    %125 = vector.broadcast %cst_39 : f32 to vector<16x192xf32>
    %126 = arith.mulf %125, %124 : vector<16x192xf32>
    %127 = math.tanh %126 : vector<16x192xf32>
    %cst_40 = arith.constant 5.000000e-01 : f32
    %128 = vector.broadcast %cst_40 : f32 to vector<16x192xf32>
    %129 = arith.mulf %128, %127 : vector<16x192xf32>
    %cst_41 = arith.constant 5.000000e-01 : f32
    %130 = vector.broadcast %cst_41 : f32 to vector<16x192xf32>
    %131 = arith.addf %129, %130 : vector<16x192xf32>
    %132 = vector.extract_strided_slice %131 {offsets = [0, 0], sizes = [16, 64], strides = [1, 1]} : vector<16x192xf32> to vector<16x64xf32>
    %133 = vector.extract_strided_slice %131 {offsets = [0, 64], sizes = [16, 64], strides = [1, 1]} : vector<16x192xf32> to vector<16x64xf32>
    %134 = vector.extract_strided_slice %131 {offsets = [0, 128], sizes = [16, 64], strides = [1, 1]} : vector<16x192xf32> to vector<16x64xf32>
    %135 = vector.extract_strided_slice %123 {offsets = [0, 192], sizes = [16, 64], strides = [1, 1]} : vector<16x256xf32> to vector<16x64xf32>
    %136 = math.tanh %135 : vector<16x64xf32>
    %137 = arith.mulf %133, %117 : vector<16x64xf32>
    %138 = arith.mulf %132, %136 : vector<16x64xf32>
    %139 = arith.addf %137, %138 : vector<16x64xf32>
    %140 = math.tanh %139 : vector<16x64xf32>
    %141 = arith.mulf %134, %140 : vector<16x64xf32>
    %c96 = arith.constant 96 : index
    %c0_42 = arith.constant 0 : index
    %142 = vector.load %arg10[%c96, %c0_42] : memref<256x256xf32, #tpu.memory_space<vmem>>, vector<16x256xf32>
    %143 = arith.truncf %141 : vector<16x64xf32> to vector<16x64xbf16>
    %cst_43 = arith.constant dense<0.000000e+00> : vector<16x256xf32>
    %144 = tpu.matmul %143, %7, %cst_43 {dimension_numbers = #tpu.dot_dimension_numbers<[1], [0], [0], [1], [0, 0, 1, 1], [], []>} : vector<16x64xbf16>, vector<64x256xbf16>, vector<16x256xf32> -> vector<16x256xf32>
    %145 = arith.addf %142, %144 : vector<16x256xf32>
    %146 = vector.extract_strided_slice %145 {offsets = [0, 0], sizes = [16, 192], strides = [1, 1]} : vector<16x256xf32> to vector<16x192xf32>
    %cst_44 = arith.constant 5.000000e-01 : f32
    %147 = vector.broadcast %cst_44 : f32 to vector<16x192xf32>
    %148 = arith.mulf %147, %146 : vector<16x192xf32>
    %149 = math.tanh %148 : vector<16x192xf32>
    %cst_45 = arith.constant 5.000000e-01 : f32
    %150 = vector.broadcast %cst_45 : f32 to vector<16x192xf32>
    %151 = arith.mulf %150, %149 : vector<16x192xf32>
    %cst_46 = arith.constant 5.000000e-01 : f32
    %152 = vector.broadcast %cst_46 : f32 to vector<16x192xf32>
    %153 = arith.addf %151, %152 : vector<16x192xf32>
    %154 = vector.extract_strided_slice %153 {offsets = [0, 0], sizes = [16, 64], strides = [1, 1]} : vector<16x192xf32> to vector<16x64xf32>
    %155 = vector.extract_strided_slice %153 {offsets = [0, 64], sizes = [16, 64], strides = [1, 1]} : vector<16x192xf32> to vector<16x64xf32>
    %156 = vector.extract_strided_slice %153 {offsets = [0, 128], sizes = [16, 64], strides = [1, 1]} : vector<16x192xf32> to vector<16x64xf32>
    %157 = vector.extract_strided_slice %145 {offsets = [0, 192], sizes = [16, 64], strides = [1, 1]} : vector<16x256xf32> to vector<16x64xf32>
    %158 = math.tanh %157 : vector<16x64xf32>
    %159 = arith.mulf %155, %139 : vector<16x64xf32>
    %160 = arith.mulf %154, %158 : vector<16x64xf32>
    %161 = arith.addf %159, %160 : vector<16x64xf32>
    %162 = math.tanh %161 : vector<16x64xf32>
    %163 = arith.mulf %156, %162 : vector<16x64xf32>
    %c112 = arith.constant 112 : index
    %c0_47 = arith.constant 0 : index
    %164 = vector.load %arg10[%c112, %c0_47] : memref<256x256xf32, #tpu.memory_space<vmem>>, vector<16x256xf32>
    %165 = arith.truncf %163 : vector<16x64xf32> to vector<16x64xbf16>
    %cst_48 = arith.constant dense<0.000000e+00> : vector<16x256xf32>
    %166 = tpu.matmul %165, %7, %cst_48 {dimension_numbers = #tpu.dot_dimension_numbers<[1], [0], [0], [1], [0, 0, 1, 1], [], []>} : vector<16x64xbf16>, vector<64x256xbf16>, vector<16x256xf32> -> vector<16x256xf32>
    %167 = arith.addf %164, %166 : vector<16x256xf32>
    %168 = vector.extract_strided_slice %167 {offsets = [0, 0], sizes = [16, 192], strides = [1, 1]} : vector<16x256xf32> to vector<16x192xf32>
    %cst_49 = arith.constant 5.000000e-01 : f32
    %169 = vector.broadcast %cst_49 : f32 to vector<16x192xf32>
    %170 = arith.mulf %169, %168 : vector<16x192xf32>
    %171 = math.tanh %170 : vector<16x192xf32>
    %cst_50 = arith.constant 5.000000e-01 : f32
    %172 = vector.broadcast %cst_50 : f32 to vector<16x192xf32>
    %173 = arith.mulf %172, %171 : vector<16x192xf32>
    %cst_51 = arith.constant 5.000000e-01 : f32
    %174 = vector.broadcast %cst_51 : f32 to vector<16x192xf32>
    %175 = arith.addf %173, %174 : vector<16x192xf32>
    %176 = vector.extract_strided_slice %175 {offsets = [0, 0], sizes = [16, 64], strides = [1, 1]} : vector<16x192xf32> to vector<16x64xf32>
    %177 = vector.extract_strided_slice %175 {offsets = [0, 64], sizes = [16, 64], strides = [1, 1]} : vector<16x192xf32> to vector<16x64xf32>
    %178 = vector.extract_strided_slice %175 {offsets = [0, 128], sizes = [16, 64], strides = [1, 1]} : vector<16x192xf32> to vector<16x64xf32>
    %179 = vector.extract_strided_slice %167 {offsets = [0, 192], sizes = [16, 64], strides = [1, 1]} : vector<16x256xf32> to vector<16x64xf32>
    %180 = math.tanh %179 : vector<16x64xf32>
    %181 = arith.mulf %177, %161 : vector<16x64xf32>
    %182 = arith.mulf %176, %180 : vector<16x64xf32>
    %183 = arith.addf %181, %182 : vector<16x64xf32>
    %184 = math.tanh %183 : vector<16x64xf32>
    %185 = arith.mulf %178, %184 : vector<16x64xf32>
    %c128 = arith.constant 128 : index
    %c0_52 = arith.constant 0 : index
    %186 = vector.load %arg10[%c128, %c0_52] : memref<256x256xf32, #tpu.memory_space<vmem>>, vector<16x256xf32>
    %187 = arith.truncf %185 : vector<16x64xf32> to vector<16x64xbf16>
    %cst_53 = arith.constant dense<0.000000e+00> : vector<16x256xf32>
    %188 = tpu.matmul %187, %7, %cst_53 {dimension_numbers = #tpu.dot_dimension_numbers<[1], [0], [0], [1], [0, 0, 1, 1], [], []>} : vector<16x64xbf16>, vector<64x256xbf16>, vector<16x256xf32> -> vector<16x256xf32>
    %189 = arith.addf %186, %188 : vector<16x256xf32>
    %190 = vector.extract_strided_slice %189 {offsets = [0, 0], sizes = [16, 192], strides = [1, 1]} : vector<16x256xf32> to vector<16x192xf32>
    %cst_54 = arith.constant 5.000000e-01 : f32
    %191 = vector.broadcast %cst_54 : f32 to vector<16x192xf32>
    %192 = arith.mulf %191, %190 : vector<16x192xf32>
    %193 = math.tanh %192 : vector<16x192xf32>
    %cst_55 = arith.constant 5.000000e-01 : f32
    %194 = vector.broadcast %cst_55 : f32 to vector<16x192xf32>
    %195 = arith.mulf %194, %193 : vector<16x192xf32>
    %cst_56 = arith.constant 5.000000e-01 : f32
    %196 = vector.broadcast %cst_56 : f32 to vector<16x192xf32>
    %197 = arith.addf %195, %196 : vector<16x192xf32>
    %198 = vector.extract_strided_slice %197 {offsets = [0, 0], sizes = [16, 64], strides = [1, 1]} : vector<16x192xf32> to vector<16x64xf32>
    %199 = vector.extract_strided_slice %197 {offsets = [0, 64], sizes = [16, 64], strides = [1, 1]} : vector<16x192xf32> to vector<16x64xf32>
    %200 = vector.extract_strided_slice %197 {offsets = [0, 128], sizes = [16, 64], strides = [1, 1]} : vector<16x192xf32> to vector<16x64xf32>
    %201 = vector.extract_strided_slice %189 {offsets = [0, 192], sizes = [16, 64], strides = [1, 1]} : vector<16x256xf32> to vector<16x64xf32>
    %202 = math.tanh %201 : vector<16x64xf32>
    %203 = arith.mulf %199, %183 : vector<16x64xf32>
    %204 = arith.mulf %198, %202 : vector<16x64xf32>
    %205 = arith.addf %203, %204 : vector<16x64xf32>
    %206 = math.tanh %205 : vector<16x64xf32>
    %207 = arith.mulf %200, %206 : vector<16x64xf32>
    %c144 = arith.constant 144 : index
    %c0_57 = arith.constant 0 : index
    %208 = vector.load %arg10[%c144, %c0_57] : memref<256x256xf32, #tpu.memory_space<vmem>>, vector<16x256xf32>
    %209 = arith.truncf %207 : vector<16x64xf32> to vector<16x64xbf16>
    %cst_58 = arith.constant dense<0.000000e+00> : vector<16x256xf32>
    %210 = tpu.matmul %209, %7, %cst_58 {dimension_numbers = #tpu.dot_dimension_numbers<[1], [0], [0], [1], [0, 0, 1, 1], [], []>} : vector<16x64xbf16>, vector<64x256xbf16>, vector<16x256xf32> -> vector<16x256xf32>
    %211 = arith.addf %208, %210 : vector<16x256xf32>
    %212 = vector.extract_strided_slice %211 {offsets = [0, 0], sizes = [16, 192], strides = [1, 1]} : vector<16x256xf32> to vector<16x192xf32>
    %cst_59 = arith.constant 5.000000e-01 : f32
    %213 = vector.broadcast %cst_59 : f32 to vector<16x192xf32>
    %214 = arith.mulf %213, %212 : vector<16x192xf32>
    %215 = math.tanh %214 : vector<16x192xf32>
    %cst_60 = arith.constant 5.000000e-01 : f32
    %216 = vector.broadcast %cst_60 : f32 to vector<16x192xf32>
    %217 = arith.mulf %216, %215 : vector<16x192xf32>
    %cst_61 = arith.constant 5.000000e-01 : f32
    %218 = vector.broadcast %cst_61 : f32 to vector<16x192xf32>
    %219 = arith.addf %217, %218 : vector<16x192xf32>
    %220 = vector.extract_strided_slice %219 {offsets = [0, 0], sizes = [16, 64], strides = [1, 1]} : vector<16x192xf32> to vector<16x64xf32>
    %221 = vector.extract_strided_slice %219 {offsets = [0, 64], sizes = [16, 64], strides = [1, 1]} : vector<16x192xf32> to vector<16x64xf32>
    %222 = vector.extract_strided_slice %219 {offsets = [0, 128], sizes = [16, 64], strides = [1, 1]} : vector<16x192xf32> to vector<16x64xf32>
    %223 = vector.extract_strided_slice %211 {offsets = [0, 192], sizes = [16, 64], strides = [1, 1]} : vector<16x256xf32> to vector<16x64xf32>
    %224 = math.tanh %223 : vector<16x64xf32>
    %225 = arith.mulf %221, %205 : vector<16x64xf32>
    %226 = arith.mulf %220, %224 : vector<16x64xf32>
    %227 = arith.addf %225, %226 : vector<16x64xf32>
    %228 = math.tanh %227 : vector<16x64xf32>
    %229 = arith.mulf %222, %228 : vector<16x64xf32>
    %c160 = arith.constant 160 : index
    %c0_62 = arith.constant 0 : index
    %230 = vector.load %arg10[%c160, %c0_62] : memref<256x256xf32, #tpu.memory_space<vmem>>, vector<16x256xf32>
    %231 = arith.truncf %229 : vector<16x64xf32> to vector<16x64xbf16>
    %cst_63 = arith.constant dense<0.000000e+00> : vector<16x256xf32>
    %232 = tpu.matmul %231, %7, %cst_63 {dimension_numbers = #tpu.dot_dimension_numbers<[1], [0], [0], [1], [0, 0, 1, 1], [], []>} : vector<16x64xbf16>, vector<64x256xbf16>, vector<16x256xf32> -> vector<16x256xf32>
    %233 = arith.addf %230, %232 : vector<16x256xf32>
    %234 = vector.extract_strided_slice %233 {offsets = [0, 0], sizes = [16, 192], strides = [1, 1]} : vector<16x256xf32> to vector<16x192xf32>
    %cst_64 = arith.constant 5.000000e-01 : f32
    %235 = vector.broadcast %cst_64 : f32 to vector<16x192xf32>
    %236 = arith.mulf %235, %234 : vector<16x192xf32>
    %237 = math.tanh %236 : vector<16x192xf32>
    %cst_65 = arith.constant 5.000000e-01 : f32
    %238 = vector.broadcast %cst_65 : f32 to vector<16x192xf32>
    %239 = arith.mulf %238, %237 : vector<16x192xf32>
    %cst_66 = arith.constant 5.000000e-01 : f32
    %240 = vector.broadcast %cst_66 : f32 to vector<16x192xf32>
    %241 = arith.addf %239, %240 : vector<16x192xf32>
    %242 = vector.extract_strided_slice %241 {offsets = [0, 0], sizes = [16, 64], strides = [1, 1]} : vector<16x192xf32> to vector<16x64xf32>
    %243 = vector.extract_strided_slice %241 {offsets = [0, 64], sizes = [16, 64], strides = [1, 1]} : vector<16x192xf32> to vector<16x64xf32>
    %244 = vector.extract_strided_slice %241 {offsets = [0, 128], sizes = [16, 64], strides = [1, 1]} : vector<16x192xf32> to vector<16x64xf32>
    %245 = vector.extract_strided_slice %233 {offsets = [0, 192], sizes = [16, 64], strides = [1, 1]} : vector<16x256xf32> to vector<16x64xf32>
    %246 = math.tanh %245 : vector<16x64xf32>
    %247 = arith.mulf %243, %227 : vector<16x64xf32>
    %248 = arith.mulf %242, %246 : vector<16x64xf32>
    %249 = arith.addf %247, %248 : vector<16x64xf32>
    %250 = math.tanh %249 : vector<16x64xf32>
    %251 = arith.mulf %244, %250 : vector<16x64xf32>
    %c176 = arith.constant 176 : index
    %c0_67 = arith.constant 0 : index
    %252 = vector.load %arg10[%c176, %c0_67] : memref<256x256xf32, #tpu.memory_space<vmem>>, vector<16x256xf32>
    %253 = arith.truncf %251 : vector<16x64xf32> to vector<16x64xbf16>
    %cst_68 = arith.constant dense<0.000000e+00> : vector<16x256xf32>
    %254 = tpu.matmul %253, %7, %cst_68 {dimension_numbers = #tpu.dot_dimension_numbers<[1], [0], [0], [1], [0, 0, 1, 1], [], []>} : vector<16x64xbf16>, vector<64x256xbf16>, vector<16x256xf32> -> vector<16x256xf32>
    %255 = arith.addf %252, %254 : vector<16x256xf32>
    %256 = vector.extract_strided_slice %255 {offsets = [0, 0], sizes = [16, 192], strides = [1, 1]} : vector<16x256xf32> to vector<16x192xf32>
    %cst_69 = arith.constant 5.000000e-01 : f32
    %257 = vector.broadcast %cst_69 : f32 to vector<16x192xf32>
    %258 = arith.mulf %257, %256 : vector<16x192xf32>
    %259 = math.tanh %258 : vector<16x192xf32>
    %cst_70 = arith.constant 5.000000e-01 : f32
    %260 = vector.broadcast %cst_70 : f32 to vector<16x192xf32>
    %261 = arith.mulf %260, %259 : vector<16x192xf32>
    %cst_71 = arith.constant 5.000000e-01 : f32
    %262 = vector.broadcast %cst_71 : f32 to vector<16x192xf32>
    %263 = arith.addf %261, %262 : vector<16x192xf32>
    %264 = vector.extract_strided_slice %263 {offsets = [0, 0], sizes = [16, 64], strides = [1, 1]} : vector<16x192xf32> to vector<16x64xf32>
    %265 = vector.extract_strided_slice %263 {offsets = [0, 64], sizes = [16, 64], strides = [1, 1]} : vector<16x192xf32> to vector<16x64xf32>
    %266 = vector.extract_strided_slice %263 {offsets = [0, 128], sizes = [16, 64], strides = [1, 1]} : vector<16x192xf32> to vector<16x64xf32>
    %267 = vector.extract_strided_slice %255 {offsets = [0, 192], sizes = [16, 64], strides = [1, 1]} : vector<16x256xf32> to vector<16x64xf32>
    %268 = math.tanh %267 : vector<16x64xf32>
    %269 = arith.mulf %265, %249 : vector<16x64xf32>
    %270 = arith.mulf %264, %268 : vector<16x64xf32>
    %271 = arith.addf %269, %270 : vector<16x64xf32>
    %272 = math.tanh %271 : vector<16x64xf32>
    %273 = arith.mulf %266, %272 : vector<16x64xf32>
    %c192 = arith.constant 192 : index
    %c0_72 = arith.constant 0 : index
    %274 = vector.load %arg10[%c192, %c0_72] : memref<256x256xf32, #tpu.memory_space<vmem>>, vector<16x256xf32>
    %275 = arith.truncf %273 : vector<16x64xf32> to vector<16x64xbf16>
    %cst_73 = arith.constant dense<0.000000e+00> : vector<16x256xf32>
    %276 = tpu.matmul %275, %7, %cst_73 {dimension_numbers = #tpu.dot_dimension_numbers<[1], [0], [0], [1], [0, 0, 1, 1], [], []>} : vector<16x64xbf16>, vector<64x256xbf16>, vector<16x256xf32> -> vector<16x256xf32>
    %277 = arith.addf %274, %276 : vector<16x256xf32>
    %278 = vector.extract_strided_slice %277 {offsets = [0, 0], sizes = [16, 192], strides = [1, 1]} : vector<16x256xf32> to vector<16x192xf32>
    %cst_74 = arith.constant 5.000000e-01 : f32
    %279 = vector.broadcast %cst_74 : f32 to vector<16x192xf32>
    %280 = arith.mulf %279, %278 : vector<16x192xf32>
    %281 = math.tanh %280 : vector<16x192xf32>
    %cst_75 = arith.constant 5.000000e-01 : f32
    %282 = vector.broadcast %cst_75 : f32 to vector<16x192xf32>
    %283 = arith.mulf %282, %281 : vector<16x192xf32>
    %cst_76 = arith.constant 5.000000e-01 : f32
    %284 = vector.broadcast %cst_76 : f32 to vector<16x192xf32>
    %285 = arith.addf %283, %284 : vector<16x192xf32>
    %286 = vector.extract_strided_slice %285 {offsets = [0, 0], sizes = [16, 64], strides = [1, 1]} : vector<16x192xf32> to vector<16x64xf32>
    %287 = vector.extract_strided_slice %285 {offsets = [0, 64], sizes = [16, 64], strides = [1, 1]} : vector<16x192xf32> to vector<16x64xf32>
    %288 = vector.extract_strided_slice %285 {offsets = [0, 128], sizes = [16, 64], strides = [1, 1]} : vector<16x192xf32> to vector<16x64xf32>
    %289 = vector.extract_strided_slice %277 {offsets = [0, 192], sizes = [16, 64], strides = [1, 1]} : vector<16x256xf32> to vector<16x64xf32>
    %290 = math.tanh %289 : vector<16x64xf32>
    %291 = arith.mulf %287, %271 : vector<16x64xf32>
    %292 = arith.mulf %286, %290 : vector<16x64xf32>
    %293 = arith.addf %291, %292 : vector<16x64xf32>
    %294 = math.tanh %293 : vector<16x64xf32>
    %295 = arith.mulf %288, %294 : vector<16x64xf32>
    %c208 = arith.constant 208 : index
    %c0_77 = arith.constant 0 : index
    %296 = vector.load %arg10[%c208, %c0_77] : memref<256x256xf32, #tpu.memory_space<vmem>>, vector<16x256xf32>
    %297 = arith.truncf %295 : vector<16x64xf32> to vector<16x64xbf16>
    %cst_78 = arith.constant dense<0.000000e+00> : vector<16x256xf32>
    %298 = tpu.matmul %297, %7, %cst_78 {dimension_numbers = #tpu.dot_dimension_numbers<[1], [0], [0], [1], [0, 0, 1, 1], [], []>} : vector<16x64xbf16>, vector<64x256xbf16>, vector<16x256xf32> -> vector<16x256xf32>
    %299 = arith.addf %296, %298 : vector<16x256xf32>
    %300 = vector.extract_strided_slice %299 {offsets = [0, 0], sizes = [16, 192], strides = [1, 1]} : vector<16x256xf32> to vector<16x192xf32>
    %cst_79 = arith.constant 5.000000e-01 : f32
    %301 = vector.broadcast %cst_79 : f32 to vector<16x192xf32>
    %302 = arith.mulf %301, %300 : vector<16x192xf32>
    %303 = math.tanh %302 : vector<16x192xf32>
    %cst_80 = arith.constant 5.000000e-01 : f32
    %304 = vector.broadcast %cst_80 : f32 to vector<16x192xf32>
    %305 = arith.mulf %304, %303 : vector<16x192xf32>
    %cst_81 = arith.constant 5.000000e-01 : f32
    %306 = vector.broadcast %cst_81 : f32 to vector<16x192xf32>
    %307 = arith.addf %305, %306 : vector<16x192xf32>
    %308 = vector.extract_strided_slice %307 {offsets = [0, 0], sizes = [16, 64], strides = [1, 1]} : vector<16x192xf32> to vector<16x64xf32>
    %309 = vector.extract_strided_slice %307 {offsets = [0, 64], sizes = [16, 64], strides = [1, 1]} : vector<16x192xf32> to vector<16x64xf32>
    %310 = vector.extract_strided_slice %307 {offsets = [0, 128], sizes = [16, 64], strides = [1, 1]} : vector<16x192xf32> to vector<16x64xf32>
    %311 = vector.extract_strided_slice %299 {offsets = [0, 192], sizes = [16, 64], strides = [1, 1]} : vector<16x256xf32> to vector<16x64xf32>
    %312 = math.tanh %311 : vector<16x64xf32>
    %313 = arith.mulf %309, %293 : vector<16x64xf32>
    %314 = arith.mulf %308, %312 : vector<16x64xf32>
    %315 = arith.addf %313, %314 : vector<16x64xf32>
    %316 = math.tanh %315 : vector<16x64xf32>
    %317 = arith.mulf %310, %316 : vector<16x64xf32>
    %c224 = arith.constant 224 : index
    %c0_82 = arith.constant 0 : index
    %318 = vector.load %arg10[%c224, %c0_82] : memref<256x256xf32, #tpu.memory_space<vmem>>, vector<16x256xf32>
    %319 = arith.truncf %317 : vector<16x64xf32> to vector<16x64xbf16>
    %cst_83 = arith.constant dense<0.000000e+00> : vector<16x256xf32>
    %320 = tpu.matmul %319, %7, %cst_83 {dimension_numbers = #tpu.dot_dimension_numbers<[1], [0], [0], [1], [0, 0, 1, 1], [], []>} : vector<16x64xbf16>, vector<64x256xbf16>, vector<16x256xf32> -> vector<16x256xf32>
    %321 = arith.addf %318, %320 : vector<16x256xf32>
    %322 = vector.extract_strided_slice %321 {offsets = [0, 0], sizes = [16, 192], strides = [1, 1]} : vector<16x256xf32> to vector<16x192xf32>
    %cst_84 = arith.constant 5.000000e-01 : f32
    %323 = vector.broadcast %cst_84 : f32 to vector<16x192xf32>
    %324 = arith.mulf %323, %322 : vector<16x192xf32>
    %325 = math.tanh %324 : vector<16x192xf32>
    %cst_85 = arith.constant 5.000000e-01 : f32
    %326 = vector.broadcast %cst_85 : f32 to vector<16x192xf32>
    %327 = arith.mulf %326, %325 : vector<16x192xf32>
    %cst_86 = arith.constant 5.000000e-01 : f32
    %328 = vector.broadcast %cst_86 : f32 to vector<16x192xf32>
    %329 = arith.addf %327, %328 : vector<16x192xf32>
    %330 = vector.extract_strided_slice %329 {offsets = [0, 0], sizes = [16, 64], strides = [1, 1]} : vector<16x192xf32> to vector<16x64xf32>
    %331 = vector.extract_strided_slice %329 {offsets = [0, 64], sizes = [16, 64], strides = [1, 1]} : vector<16x192xf32> to vector<16x64xf32>
    %332 = vector.extract_strided_slice %329 {offsets = [0, 128], sizes = [16, 64], strides = [1, 1]} : vector<16x192xf32> to vector<16x64xf32>
    %333 = vector.extract_strided_slice %321 {offsets = [0, 192], sizes = [16, 64], strides = [1, 1]} : vector<16x256xf32> to vector<16x64xf32>
    %334 = math.tanh %333 : vector<16x64xf32>
    %335 = arith.mulf %331, %315 : vector<16x64xf32>
    %336 = arith.mulf %330, %334 : vector<16x64xf32>
    %337 = arith.addf %335, %336 : vector<16x64xf32>
    %338 = math.tanh %337 : vector<16x64xf32>
    %339 = arith.mulf %332, %338 : vector<16x64xf32>
    %c240 = arith.constant 240 : index
    %c0_87 = arith.constant 0 : index
    %340 = vector.load %arg10[%c240, %c0_87] : memref<256x256xf32, #tpu.memory_space<vmem>>, vector<16x256xf32>
    %341 = arith.truncf %339 : vector<16x64xf32> to vector<16x64xbf16>
    %cst_88 = arith.constant dense<0.000000e+00> : vector<16x256xf32>
    %342 = tpu.matmul %341, %7, %cst_88 {dimension_numbers = #tpu.dot_dimension_numbers<[1], [0], [0], [1], [0, 0, 1, 1], [], []>} : vector<16x64xbf16>, vector<64x256xbf16>, vector<16x256xf32> -> vector<16x256xf32>
    %343 = arith.addf %340, %342 : vector<16x256xf32>
    %344 = vector.extract_strided_slice %343 {offsets = [0, 0], sizes = [16, 192], strides = [1, 1]} : vector<16x256xf32> to vector<16x192xf32>
    %cst_89 = arith.constant 5.000000e-01 : f32
    %345 = vector.broadcast %cst_89 : f32 to vector<16x192xf32>
    %346 = arith.mulf %345, %344 : vector<16x192xf32>
    %347 = math.tanh %346 : vector<16x192xf32>
    %cst_90 = arith.constant 5.000000e-01 : f32
    %348 = vector.broadcast %cst_90 : f32 to vector<16x192xf32>
    %349 = arith.mulf %348, %347 : vector<16x192xf32>
    %cst_91 = arith.constant 5.000000e-01 : f32
    %350 = vector.broadcast %cst_91 : f32 to vector<16x192xf32>
    %351 = arith.addf %349, %350 : vector<16x192xf32>
    %352 = vector.extract_strided_slice %351 {offsets = [0, 0], sizes = [16, 64], strides = [1, 1]} : vector<16x192xf32> to vector<16x64xf32>
    %353 = vector.extract_strided_slice %351 {offsets = [0, 64], sizes = [16, 64], strides = [1, 1]} : vector<16x192xf32> to vector<16x64xf32>
    %354 = vector.extract_strided_slice %351 {offsets = [0, 128], sizes = [16, 64], strides = [1, 1]} : vector<16x192xf32> to vector<16x64xf32>
    %355 = vector.extract_strided_slice %343 {offsets = [0, 192], sizes = [16, 64], strides = [1, 1]} : vector<16x256xf32> to vector<16x64xf32>
    %356 = math.tanh %355 : vector<16x64xf32>
    %357 = arith.mulf %353, %337 : vector<16x64xf32>
    %358 = arith.mulf %352, %356 : vector<16x64xf32>
    %359 = arith.addf %357, %358 : vector<16x64xf32>
    %360 = math.tanh %359 : vector<16x64xf32>
    %361 = arith.mulf %354, %360 : vector<16x64xf32>
    %cst_92 = arith.constant 0.000000e+00 : f32
    %362 = vector.broadcast %cst_92 : f32 to vector<16x64xf32>
    %363 = arith.maximumf %361, %362 : vector<16x64xf32>
    %c0_93 = arith.constant 0 : index
    %c0_94 = arith.constant 0 : index
    %364 = vector.load %arg5[%c0_93, %c0_94] : memref<64x128xf32, #tpu.memory_space<vmem>>, vector<64x128xf32>
    %cst_95 = arith.constant dense<0.000000e+00> : vector<16x128xf32>
    %365 = tpu.matmul %363, %364, %cst_95 {dimension_numbers = #tpu.dot_dimension_numbers<[1], [0], [0], [1], [0, 0, 1, 1], [], []>} : vector<16x64xf32>, vector<64x128xf32>, vector<16x128xf32> -> vector<16x128xf32>
    %c0_96 = arith.constant 0 : index
    %c0_97 = arith.constant 0 : index
    %366 = vector.load %arg6[%c0_96, %c0_97] : memref<1x128xf32, #tpu.memory_space<vmem>>, vector<1x128xf32>
    %367 = vector.broadcast %366 : vector<1x128xf32> to vector<16x128xf32>
    %368 = arith.addf %365, %367 : vector<16x128xf32>
    %cst_98 = arith.constant 0.000000e+00 : f32
    %369 = vector.broadcast %cst_98 : f32 to vector<16x128xf32>
    %370 = arith.maximumf %368, %369 : vector<16x128xf32>
    %c0_99 = arith.constant 0 : index
    %c0_100 = arith.constant 0 : index
    %371 = vector.load %arg7[%c0_99, %c0_100] : memref<128x1xf32, #tpu.memory_space<vmem>>, vector<128x1xf32>
    %cst_101 = arith.constant dense<0.000000e+00> : vector<16x1xf32>
    %372 = tpu.matmul %370, %371, %cst_101 {dimension_numbers = #tpu.dot_dimension_numbers<[1], [0], [0], [1], [0, 0, 1, 1], [], []>} : vector<16x128xf32>, vector<128x1xf32>, vector<16x1xf32> -> vector<16x1xf32>
    %c0_102 = arith.constant 0 : index
    %c0_103 = arith.constant 0 : index
    %373 = vector.load %arg8[%c0_102, %c0_103] : memref<1x1xf32, #tpu.memory_space<vmem>>, vector<1x1xf32>
    %374 = vector.broadcast %373 : vector<1x1xf32> to vector<16x1xf32>
    %375 = arith.addf %372, %374 : vector<16x1xf32>
    %c0_104 = arith.constant 0 : index
    %c0_105 = arith.constant 0 : index
    %376 = vector.load %arg9[%c0_104, %c0_105] : memref<16x1xf32, #tpu.memory_space<vmem>>, vector<16x1xf32>
    tpu.vector_store %arg9[%c0_104, %c0_105], %375 {strides = array<i32>} : memref<16x1xf32, #tpu.memory_space<vmem>>, vector<16x1xf32>,
    return
  }
  func.func @transform_0(%arg0: i32) -> (i32, i32) {
    %c0_i32 = arith.constant 0 : i32
    %c0_i32_0 = arith.constant 0 : i32
    return %arg0, %c0_i32 : i32, i32
  }
  func.func @transform_1(%arg0: i32) -> (i32, i32) {
    %c0_i32 = arith.constant 0 : i32
    %c0_i32_0 = arith.constant 0 : i32
    %c0_i32_1 = arith.constant 0 : i32
    return %c0_i32, %c0_i32_0 : i32, i32
  }
  func.func @transform_2(%arg0: i32) -> (i32, i32) {
    %c0_i32 = arith.constant 0 : i32
    %c0_i32_0 = arith.constant 0 : i32
    %c0_i32_1 = arith.constant 0 : i32
    return %c0_i32, %c0_i32_0 : i32, i32
  }
  func.func @transform_3(%arg0: i32) -> (i32, i32) {
    %c0_i32 = arith.constant 0 : i32
    %c0_i32_0 = arith.constant 0 : i32
    %c0_i32_1 = arith.constant 0 : i32
    return %c0_i32, %c0_i32_0 : i32, i32
  }
  func.func @transform_4(%arg0: i32) -> (i32, i32) {
    %c0_i32 = arith.constant 0 : i32
    %c0_i32_0 = arith.constant 0 : i32
    %c0_i32_1 = arith.constant 0 : i32
    return %c0_i32, %c0_i32_0 : i32, i32
  }
  func.func @transform_5(%arg0: i32) -> (i32, i32) {
    %c0_i32 = arith.constant 0 : i32
    %c0_i32_0 = arith.constant 0 : i32
    %c0_i32_1 = arith.constant 0 : i32
    return %c0_i32, %c0_i32_0 : i32, i32
  }
  func.func @transform_6(%arg0: i32) -> (i32, i32) {
    %c0_i32 = arith.constant 0 : i32
    %c0_i32_0 = arith.constant 0 : i32
    %c0_i32_1 = arith.constant 0 : i32
    return %c0_i32, %c0_i32_0 : i32, i32
  }
  func.func @transform_7(%arg0: i32) -> (i32, i32) {
    %c0_i32 = arith.constant 0 : i32
    %c0_i32_0 = arith.constant 0 : i32
    %c0_i32_1 = arith.constant 0 : i32
    return %c0_i32, %c0_i32_0 : i32, i32
  }
  func.func @transform_8(%arg0: i32) -> (i32, i32) {
    %c0_i32 = arith.constant 0 : i32
    %c0_i32_0 = arith.constant 0 : i32
    return %arg0, %c0_i32 : i32, i32
  }
}

</mosaic_0001>

<llo_original>
// kernel: tpu_custom_call.1
$region0: #{tpu_custom_call.1}
  #allocation0 [shape = 'u32[]', space=smem, size = 0x4, offset = 0x4, fixed_abs, tag = 'smem constant byte address 0x4 - core index']
  #allocation1 [shape = 'u32[144,128]{1,0:T(1,128)}', space=vmem, size = 0x12000, scoped, tag = 'internal scratch']
  #allocation2 [shape = 'f32[256,256]{1,0:T(8,128)}', space=vmem, size = 0x40000, scoped, tag = 'scratch operand']
  #allocation3 [shape = 'f32[1,1]{1,0:T(1,128)S(1)}', space=vmem, size = 0x200, scoped, tag = 'scoped memory for tpu_custom_call.1']
  %s0 = inlined_call_operand.vmem [shape: bf16[256,24], index: 0, kind: input, shape index: {}]
  %s1 = inlined_call_operand.vmem [shape: bf16[24,256], index: 1, kind: input, shape index: {}]
  %s2 = inlined_call_operand.vmem [shape: f32[1,256], index: 2, kind: input, shape index: {}]
  %s3 = inlined_call_operand.vmem [shape: bf16[64,256], index: 3, kind: input, shape index: {}]
  %s4 = inlined_call_operand.vmem [shape: f32[64,128], index: 4, kind: input, shape index: {}]
  %s5 = inlined_call_operand.vmem [shape: f32[1,128], index: 5, kind: input, shape index: {}]
  %s6 = inlined_call_operand.vmem [shape: f32[128,1], index: 6, kind: input, shape index: {}]
  %s7 = inlined_call_operand.<no memory space> [shape: f32[1,1], index: 7, kind: input, shape index: {}]
  %s8 = inlined_call_operand.vmem [shape: f32[16,1], index: 8, kind: output, shape index: {}]
  %s9 = sld [smem:[#allocation0]]
  $region42: #{tpu_custom_call.1} parent=0
    _
  %s11 = ssub.s32 1, %s9
  %s12 = scalar_select 0, %s11, %s9
  %v13 = vstv %s7
  %14 = vst [vmem:[#allocation3] sm:$0x1] %v13
  // Predicated region
  $region2: #{tpu_custom_call.1} parent=0 // pred_check
    _
  $region3: #{tpu_custom_call.1} parent=0 // pred_check_branch
    %16 = sbr.rel (0) target = $region5
  $region4: #{tpu_custom_call.1} parent=0 // pred_region
    _
  $region5: #{tpu_custom_call.1} parent=0 // pred_fallthru
    _
  // Predicated region
  $region6: #{tpu_custom_call.1} parent=0 // pred_check
    _
  $region7: #{tpu_custom_call.1} parent=0 // pred_check_branch
    %18 = sbr.rel (0) target = $region9
  $region8: #{tpu_custom_call.1} parent=0 // pred_region
    _
  $region9: #{tpu_custom_call.1} parent=0 // pred_fallthru
    _
  // Predicated region
  $region10: #{tpu_custom_call.1} parent=0 // pred_check
    _
  $region11: #{tpu_custom_call.1} parent=0 // pred_check_branch
    %20 = sbr.rel (0) target = $region13
  $region12: #{tpu_custom_call.1} parent=0 // pred_region
    _
  $region13: #{tpu_custom_call.1} parent=0 // pred_fallthru
    _
  // Predicated region
  $region14: #{tpu_custom_call.1} parent=0 // pred_check
    _
  $region15: #{tpu_custom_call.1} parent=0 // pred_check_branch
    %22 = sbr.rel (0) target = $region17
  $region16: #{tpu_custom_call.1} parent=0 // pred_region
    _
  $region17: #{tpu_custom_call.1} parent=0 // pred_fallthru
    _
  // Predicated region
  $region18: #{tpu_custom_call.1} parent=0 // pred_check
    _
  $region19: #{tpu_custom_call.1} parent=0 // pred_check_branch
    %24 = sbr.rel (0) target = $region21
  $region20: #{tpu_custom_call.1} parent=0 // pred_region
    _
  $region21: #{tpu_custom_call.1} parent=0 // pred_fallthru
    _
  // Predicated region
  $region22: #{tpu_custom_call.1} parent=0 // pred_check
    _
  $region23: #{tpu_custom_call.1} parent=0 // pred_check_branch
    %26 = sbr.rel (0) target = $region25
  $region24: #{tpu_custom_call.1} parent=0 // pred_region
    _
  $region25: #{tpu_custom_call.1} parent=0 // pred_fallthru
    _
  // Predicated region
  $region26: #{tpu_custom_call.1} parent=0 // pred_check
    _
  $region27: #{tpu_custom_call.1} parent=0 // pred_check_branch
    %28 = sbr.rel (0) target = $region29
  $region28: #{tpu_custom_call.1} parent=0 // pred_region
    _
  $region29: #{tpu_custom_call.1} parent=0 // pred_fallthru
    _
  // Predicated region
  $region30: #{tpu_custom_call.1} parent=0 // pred_check
    _
  $region31: #{tpu_custom_call.1} parent=0 // pred_check_branch
    %30 = sbr.rel (0) target = $region33
  $region32: #{tpu_custom_call.1} parent=0 // pred_region
    _
  $region33: #{tpu_custom_call.1} parent=0 // pred_fallthru
    _
  %v32 = vld [vmem:[%s0] sm:$0xf]
  %v33 = vld [vmem:[%s0 + $0x4] sm:$0xf]
  %v34 = vld [vmem:[%s0 + $0x8] sm:$0xf]
  %v35 = vld [vmem:[%s0 + $0xc] sm:$0xf]
  %v36 = vld [vmem:[%s0 + $0x10] sm:$0xf]
  %v37 = vld [vmem:[%s0 + $0x14] sm:$0xf]
  %v38 = vld [vmem:[%s0 + $0x18] sm:$0xf]
  %v39 = vld [vmem:[%s0 + $0x1c] sm:$0xf]
  %v40 = vld [vmem:[%s0 + $0x20] sm:$0xf]
  %v41 = vld [vmem:[%s0 + $0x24] sm:$0xf]
  %v42 = vld [vmem:[%s0 + $0x28] sm:$0xf]
  %v43 = vld [vmem:[%s0 + $0x2c] sm:$0xf]
  %v44 = vld [vmem:[%s0 + $0x30] sm:$0xf]
  %v45 = vld [vmem:[%s0 + $0x34] sm:$0xf]
  %v46 = vld [vmem:[%s0 + $0x38] sm:$0xf]
  %v47 = vld [vmem:[%s0 + $0x3c] sm:$0xf]
  %v48 = vld [vmem:[%s0 + $0x40] sm:$0xf]
  %v49 = vld [vmem:[%s0 + $0x44] sm:$0xf]
  %v50 = vld [vmem:[%s0 + $0x48] sm:$0xf]
  %v51 = vld [vmem:[%s0 + $0x4c] sm:$0xf]
  %v52 = vld [vmem:[%s0 + $0x50] sm:$0xf]
  %v53 = vld [vmem:[%s0 + $0x54] sm:$0xf]
  %v54 = vld [vmem:[%s0 + $0x58] sm:$0xf]
  %v55 = vld [vmem:[%s0 + $0x5c] sm:$0xf]
  %v56 = vld [vmem:[%s0 + $0x60] sm:$0xf]
  %v57 = vld [vmem:[%s0 + $0x64] sm:$0xf]
  %v58 = vld [vmem:[%s0 + $0x68] sm:$0xf]
  %v59 = vld [vmem:[%s0 + $0x6c] sm:$0xf]
  %v60 = vld [vmem:[%s0 + $0x70] sm:$0xf]
  %v61 = vld [vmem:[%s0 + $0x74] sm:$0xf]
  %v62 = vld [vmem:[%s0 + $0x78] sm:$0xf]
  %v63 = vld [vmem:[%s0 + $0x7c] sm:$0xf]
  %v64 = vld [vmem:[%s1] sm:$0xff]
  %v65 = vld [vmem:[%s1 + $0x8] sm:$0xff]
  %v66 = vld [vmem:[%s1 + $0x10] sm:$0xff]
  %v67 = vld [vmem:[%s2] sm:$0x3]
  %v69 = vlaneseq
  %v70 = vshrl.u32 %v69, 7
  %v71 = vsub.s32 0, %v70
  %v72 = vrot.slane %v67, %v71
  %v73 = vlaneseq
  %v74 = vshrl.u32 %v73, 7
  %v75 = vsub.s32 1, %v74
  %v76 = vrot.slane %v67, %v75
  %v111 = vunpack.c.l.b16 %v32
  %v112 = vunpack.c.l.b16 %v33
  %v113 = vunpack.c.l.b16 %v34
  %v114 = vunpack.c.l.b16 %v35
  %v115 = vunpack.c.l.b16 %v36
  %v116 = vunpack.c.l.b16 %v37
  %v117 = vunpack.c.l.b16 %v38
  %v118 = vunpack.c.l.b16 %v39
  %v119 = vunpack.c.l.b16 %v40
  %v120 = vunpack.c.l.b16 %v41
  %v121 = vunpack.c.l.b16 %v42
  %v122 = vunpack.c.l.b16 %v43
  %v123 = vunpack.c.l.b16 %v44
  %v124 = vunpack.c.l.b16 %v45
  %v125 = vunpack.c.l.b16 %v46
  %v126 = vunpack.c.l.b16 %v47
  %v127 = vunpack.c.l.b16 %v48
  %v128 = vunpack.c.l.b16 %v49
  %v129 = vunpack.c.l.b16 %v50
  %v130 = vunpack.c.l.b16 %v51
  %v131 = vunpack.c.l.b16 %v52
  %v132 = vunpack.c.l.b16 %v53
  %v133 = vunpack.c.l.b16 %v54
  %v134 = vunpack.c.l.b16 %v55
  %v135 = vunpack.c.l.b16 %v56
  %v136 = vunpack.c.l.b16 %v57
  %v137 = vunpack.c.l.b16 %v58
  %v138 = vunpack.c.l.b16 %v59
  %v139 = vunpack.c.l.b16 %v60
  %v140 = vunpack.c.l.b16 %v61
  %v141 = vunpack.c.l.b16 %v62
  %v142 = vunpack.c.l.b16 %v63
  %v143 = vpack.c.b16 %v112, %v111
  %v144 = vpack.c.b16 %v114, %v113
  %v145 = vpack.c.b16 %v116, %v115
  %v146 = vpack.c.b16 %v118, %v117
  %v147 = vpack.c.b16 %v120, %v119
  %v148 = vpack.c.b16 %v122, %v121
  %v149 = vpack.c.b16 %v124, %v123
  %v150 = vpack.c.b16 %v126, %v125
  %v151 = vpack.c.b16 %v128, %v127
  %v152 = vpack.c.b16 %v130, %v129
  %v153 = vpack.c.b16 %v132, %v131
  %v154 = vpack.c.b16 %v134, %v133
  %v155 = vpack.c.b16 %v136, %v135
  %v156 = vpack.c.b16 %v138, %v137
  %v157 = vpack.c.b16 %v140, %v139
  %v158 = vpack.c.b16 %v142, %v141
  %v162 = vunpack.c.l.b16 %v64
  %v163 = vunpack.c.h.b16 %v64
  %v164 = vunpack.c.l.b16 %v65
  %v165 = vunpack.c.h.b16 %v65
  %v166 = vunpack.c.l.b16 %v66
  %v167 = vunpack.c.h.b16 %v66
  %v168 = vpack.c.b16 %v164, %v162
  %v169 = vpack.c.b16 %v165, %v163
  %v170 = vpack.c.b16 %v166, %v166
  %v171 = vpack.c.b16 %v167, %v167
  %vm174 = vcmask 195584
  %v176 = vsel %vm174, %v143, 0
  %v179 = vsel %vm174, %v144, 0
  %v182 = vsel %vm174, %v145, 0
  %v185 = vsel %vm174, %v146, 0
  %v188 = vsel %vm174, %v147, 0
  %v191 = vsel %vm174, %v148, 0
  %v194 = vsel %vm174, %v149, 0
  %v197 = vsel %vm174, %v150, 0
  %v200 = vsel %vm174, %v151, 0
  %v203 = vsel %vm174, %v152, 0
  %v206 = vsel %vm174, %v153, 0
  %v209 = vsel %vm174, %v154, 0
  %v212 = vsel %vm174, %v155, 0
  %v215 = vsel %vm174, %v156, 0
  %v218 = vsel %vm174, %v157, 0
  %v221 = vsel %vm174, %v158, 0
  %vm223 = vcmask 1043456
  %v225 = vsel %vm223, %v170, 0
  %v228 = vsel %vm223, %v171, 0
  %230 = vmatprep.subr.bf16.mxu0 %v169
  %231 = vmatpush1.bf16.msra.mxu0 %v168
  %232 = vmatprep.subr.bf16.mxu0 %v228
  %233 = vmatpush1.bf16.msra.mxu0 %v225
  %234 = vmatprep.subr.bf16.mxu0 0
  %235 = vmatpush1.bf16.msra.mxu0 0
  %236 = vmatprep.subr.bf16.mxu0 0
  %237 = vmatpush1.bf16.msra.mxu0 0
  %238 = vmatprep.subr.bf16.mxu0 0
  %239 = vmatpush1.bf16.msra.mxu0 0
  %240 = vmatprep.subr.bf16.mxu0 0
  %241 = vmatpush1.bf16.msra.mxu0 0
  %242 = vmatprep.subr.bf16.mxu0 0
  %243 = vmatpush1.bf16.msra.mxu0 0
  %244 = vmatprep.subr.bf16.mxu0 0
  %245 = vmatpush1.bf16.msra.mxu0 0
  %246 = vmatprep.subr.bf16.mxu0 0
  %247 = vmatpush1.bf16.msra.mxu0 0
  %248 = vmatprep.subr.bf16.mxu0 0
  %249 = vmatpush1.bf16.msra.mxu0 0
  %250 = vmatprep.subr.bf16.mxu0 0
  %251 = vmatpush1.bf16.msra.mxu0 0
  %252 = vmatprep.subr.bf16.mxu0 0
  %253 = vmatpush1.bf16.msra.mxu0 0
  %254 = vmatprep.subr.bf16.mxu0 0
  %255 = vmatpush1.bf16.msra.mxu0 0
  %256 = vmatprep.subr.bf16.mxu0 0
  %257 = vmatpush1.bf16.msra.mxu0 0
  %258 = vmatprep.subr.bf16.mxu0 0
  %259 = vmatpush1.bf16.msra.mxu0 0
  %260 = vmatprep.subr.bf16.mxu0 0
  %261 = vmatpush1.bf16.msra.mxu0 0
  %262 = vmatprep.mubr.bf16.mxu0 0
  %263 = vmatmul.mubr.bf16.gmra.mrb[0].mxu0 %v176
  %v264 = vpop.f32.mrb[0].mxu0
  %v265 = vadd.f32 %v72, %v264
  %v266 = vpop.f32.mrb[0].mxu0
  %v267 = vadd.f32 %v76, %v266
  %v268 = vpop.f32.mrb[0].mxu0
  %v269 = vadd.f32 %v72, %v268
  %v270 = vpop.f32.mrb[0].mxu0
  %v271 = vadd.f32 %v76, %v270
  %272 = vmatprep.mubr.bf16.mxu0 0
  %273 = vmatmul.mubr.bf16.gmra.mrb[0].mxu0 %v179
  %v274 = vpop.f32.mrb[0].mxu0
  %v275 = vadd.f32 %v72, %v274
  %v276 = vpop.f32.mrb[0].mxu0
  %v277 = vadd.f32 %v76, %v276
  %v278 = vpop.f32.mrb[0].mxu0
  %v279 = vadd.f32 %v72, %v278
  %v280 = vpop.f32.mrb[0].mxu0
  %v281 = vadd.f32 %v76, %v280
  %282 = vmatprep.mubr.bf16.mxu0 0
  %283 = vmatmul.mubr.bf16.gmra.mrb[0].mxu0 %v182
  %v284 = vpop.f32.mrb[0].mxu0
  %v285 = vadd.f32 %v72, %v284
  %v286 = vpop.f32.mrb[0].mxu0
  %v287 = vadd.f32 %v76, %v286
  %v288 = vpop.f32.mrb[0].mxu0
  %v289 = vadd.f32 %v72, %v288
  %v290 = vpop.f32.mrb[0].mxu0
  %v291 = vadd.f32 %v76, %v290
  %292 = vmatprep.mubr.bf16.mxu0 0
  %293 = vmatmul.mubr.bf16.gmra.mrb[0].mxu0 %v185
  %v294 = vpop.f32.mrb[0].mxu0
  %v295 = vadd.f32 %v72, %v294
  %v296 = vpop.f32.mrb[0].mxu0
  %v297 = vadd.f32 %v76, %v296
  %v298 = vpop.f32.mrb[0].mxu0
  %v299 = vadd.f32 %v72, %v298
  %v300 = vpop.f32.mrb[0].mxu0
  %v301 = vadd.f32 %v76, %v300
  %302 = vmatprep.mubr.bf16.mxu0 0
  %303 = vmatmul.mubr.bf16.gmra.mrb[0].mxu0 %v188
  %v304 = vpop.f32.mrb[0].mxu0
  %v305 = vadd.f32 %v72, %v304
  %v306 = vpop.f32.mrb[0].mxu0
  %v307 = vadd.f32 %v76, %v306
  %v308 = vpop.f32.mrb[0].mxu0
  %v309 = vadd.f32 %v72, %v308
  %v310 = vpop.f32.mrb[0].mxu0
  %v311 = vadd.f32 %v76, %v310
  %312 = vmatprep.mubr.bf16.mxu0 0
  %313 = vmatmul.mubr.bf16.gmra.mrb[0].mxu0 %v191
  %v314 = vpop.f32.mrb[0].mxu0
  %v315 = vadd.f32 %v72, %v314
  %v316 = vpop.f32.mrb[0].mxu0
  %v317 = vadd.f32 %v76, %v316
  %v318 = vpop.f32.mrb[0].mxu0
  %v319 = vadd.f32 %v72, %v318
  %v320 = vpop.f32.mrb[0].mxu0
  %v321 = vadd.f32 %v76, %v320
  %322 = vmatprep.mubr.bf16.mxu0 0
  %323 = vmatmul.mubr.bf16.gmra.mrb[0].mxu0 %v194
  %v324 = vpop.f32.mrb[0].mxu0
  %v325 = vadd.f32 %v72, %v324
  %v326 = vpop.f32.mrb[0].mxu0
  %v327 = vadd.f32 %v76, %v326
  %v328 = vpop.f32.mrb[0].mxu0
  %v329 = vadd.f32 %v72, %v328
  %v330 = vpop.f32.mrb[0].mxu0
  %v331 = vadd.f32 %v76, %v330
  %332 = vmatprep.mubr.bf16.mxu0 0
  %333 = vmatmul.mubr.bf16.gmra.mrb[0].mxu0 %v197
  %v334 = vpop.f32.mrb[0].mxu0
  %v335 = vadd.f32 %v72, %v334
  %v336 = vpop.f32.mrb[0].mxu0
  %v337 = vadd.f32 %v76, %v336
  %v338 = vpop.f32.mrb[0].mxu0
  %v339 = vadd.f32 %v72, %v338
  %v340 = vpop.f32.mrb[0].mxu0
  %v341 = vadd.f32 %v76, %v340
  %342 = vmatprep.mubr.bf16.mxu0 0
  %343 = vmatmul.mubr.bf16.gmra.mrb[0].mxu0 %v200
  %v344 = vpop.f32.mrb[0].mxu0
  %v345 = vadd.f32 %v72, %v344
  %v346 = vpop.f32.mrb[0].mxu0
  %v347 = vadd.f32 %v76, %v346
  %v348 = vpop.f32.mrb[0].mxu0
  %v349 = vadd.f32 %v72, %v348
  %v350 = vpop.f32.mrb[0].mxu0
  %v351 = vadd.f32 %v76, %v350
  %352 = vmatprep.mubr.bf16.mxu0 0
  %353 = vmatmul.mubr.bf16.gmra.mrb[0].mxu0 %v203
  %v354 = vpop.f32.mrb[0].mxu0
  %v355 = vadd.f32 %v72, %v354
  %v356 = vpop.f32.mrb[0].mxu0
  %v357 = vadd.f32 %v76, %v356
  %v358 = vpop.f32.mrb[0].mxu0
  %v359 = vadd.f32 %v72, %v358
  %v360 = vpop.f32.mrb[0].mxu0
  %v361 = vadd.f32 %v76, %v360
  %362 = vmatprep.mubr.bf16.mxu0 0
  %363 = vmatmul.mubr.bf16.gmra.mrb[0].mxu0 %v206
  %v364 = vpop.f32.mrb[0].mxu0
  %v365 = vadd.f32 %v72, %v364
  %v366 = vpop.f32.mrb[0].mxu0
  %v367 = vadd.f32 %v76, %v366
  %v368 = vpop.f32.mrb[0].mxu0
  %v369 = vadd.f32 %v72, %v368
  %v370 = vpop.f32.mrb[0].mxu0
  %v371 = vadd.f32 %v76, %v370
  %372 = vmatprep.mubr.bf16.mxu0 0
  %373 = vmatmul.mubr.bf16.gmra.mrb[0].mxu0 %v209
  %v374 = vpop.f32.mrb[0].mxu0
  %v375 = vadd.f32 %v72, %v374
  %v376 = vpop.f32.mrb[0].mxu0
  %v377 = vadd.f32 %v76, %v376
  %v378 = vpop.f32.mrb[0].mxu0
  %v379 = vadd.f32 %v72, %v378
  %v380 = vpop.f32.mrb[0].mxu0
  %v381 = vadd.f32 %v76, %v380
  %382 = vmatprep.mubr.bf16.mxu0 0
  %383 = vmatmul.mubr.bf16.gmra.mrb[0].mxu0 %v212
  %v384 = vpop.f32.mrb[0].mxu0
  %v385 = vadd.f32 %v72, %v384
  %v386 = vpop.f32.mrb[0].mxu0
  %v387 = vadd.f32 %v76, %v386
  %v388 = vpop.f32.mrb[0].mxu0
  %v389 = vadd.f32 %v72, %v388
  %v390 = vpop.f32.mrb[0].mxu0
  %v391 = vadd.f32 %v76, %v390
  %392 = vmatprep.mubr.bf16.mxu0 0
  %393 = vmatmul.mubr.bf16.gmra.mrb[0].mxu0 %v215
  %v394 = vpop.f32.mrb[0].mxu0
  %v395 = vadd.f32 %v72, %v394
  %v396 = vpop.f32.mrb[0].mxu0
  %v397 = vadd.f32 %v76, %v396
  %v398 = vpop.f32.mrb[0].mxu0
  %v399 = vadd.f32 %v72, %v398
  %v400 = vpop.f32.mrb[0].mxu0
  %v401 = vadd.f32 %v76, %v400
  %402 = vmatprep.mubr.bf16.mxu0 0
  %403 = vmatmul.mubr.bf16.gmra.mrb[0].mxu0 %v218
  %v404 = vpop.f32.mrb[0].mxu0
  %v405 = vadd.f32 %v72, %v404
  %v406 = vpop.f32.mrb[0].mxu0
  %v407 = vadd.f32 %v76, %v406
  %v408 = vpop.f32.mrb[0].mxu0
  %v409 = vadd.f32 %v72, %v408
  %v410 = vpop.f32.mrb[0].mxu0
  %v411 = vadd.f32 %v76, %v410
  %412 = vmatprep.mubr.bf16.mxu0 0
  %413 = vmatmul.mubr.bf16.gmra.mrb[0].mxu0 %v221
  %v414 = vpop.f32.mrb[0].mxu0
  %v415 = vadd.f32 %v72, %v414
  %v416 = vpop.f32.mrb[0].mxu0
  %v417 = vadd.f32 %v76, %v416
  %v418 = vpop.f32.mrb[0].mxu0
  %v419 = vadd.f32 %v72, %v418
  %v420 = vpop.f32.mrb[0].mxu0
  %v421 = vadd.f32 %v76, %v420
  %422 = vdwg.mxu0
  %423 = vst [vmem:[#allocation2] sm:$0xff] %v265
  %424 = vst [vmem:[#allocation2 + $0x8] sm:$0xff] %v267
  %425 = vst [vmem:[#allocation2 + $0x10] sm:$0xff] %v269
  %426 = vst [vmem:[#allocation2 + $0x18] sm:$0xff] %v271
  %427 = vst [vmem:[#allocation2 + $0x20] sm:$0xff] %v275
  %428 = vst [vmem:[#allocation2 + $0x28] sm:$0xff] %v277
  %429 = vst [vmem:[#allocation2 + $0x30] sm:$0xff] %v279
  %430 = vst [vmem:[#allocation2 + $0x38] sm:$0xff] %v281
  %431 = vst [vmem:[#allocation2 + $0x40] sm:$0xff] %v285
  %432 = vst [vmem:[#allocation2 + $0x48] sm:$0xff] %v287
  %433 = vst [vmem:[#allocation2 + $0x50] sm:$0xff] %v289
  %434 = vst [vmem:[#allocation2 + $0x58] sm:$0xff] %v291
  %435 = vst [vmem:[#allocation2 + $0x60] sm:$0xff] %v295
  %436 = vst [vmem:[#allocation2 + $0x68] sm:$0xff] %v297
  %437 = vst [vmem:[#allocation2 + $0x70] sm:$0xff] %v299
  %438 = vst [vmem:[#allocation2 + $0x78] sm:$0xff] %v301
  %439 = vst [vmem:[#allocation2 + $0x80] sm:$0xff] %v305
  %440 = vst [vmem:[#allocation2 + $0x88] sm:$0xff] %v307
  %441 = vst [vmem:[#allocation2 + $0x90] sm:$0xff] %v309
  %442 = vst [vmem:[#allocation2 + $0x98] sm:$0xff] %v311
  %443 = vst [vmem:[#allocation2 + $0xa0] sm:$0xff] %v315
  %444 = vst [vmem:[#allocation2 + $0xa8] sm:$0xff] %v317
  %445 = vst [vmem:[#allocation2 + $0xb0] sm:$0xff] %v319
  %446 = vst [vmem:[#allocation2 + $0xb8] sm:$0xff] %v321
  %447 = vst [vmem:[#allocation2 + $0xc0] sm:$0xff] %v325
  %448 = vst [vmem:[#allocation2 + $0xc8] sm:$0xff] %v327
  %449 = vst [vmem:[#allocation2 + $0xd0] sm:$0xff] %v329
  %450 = vst [vmem:[#allocation2 + $0xd8] sm:$0xff] %v331
  %451 = vst [vmem:[#allocation2 + $0xe0] sm:$0xff] %v335
  %452 = vst [vmem:[#allocation2 + $0xe8] sm:$0xff] %v337
  %453 = vst [vmem:[#allocation2 + $0xf0] sm:$0xff] %v339
  %454 = vst [vmem:[#allocation2 + $0xf8] sm:$0xff] %v341
  %455 = vst [vmem:[#allocation2 + $0x100] sm:$0xff] %v345
  %456 = vst [vmem:[#allocation2 + $0x108] sm:$0xff] %v347
  %457 = vst [vmem:[#allocation2 + $0x110] sm:$0xff] %v349
  %458 = vst [vmem:[#allocation2 + $0x118] sm:$0xff] %v351
  %459 = vst [vmem:[#allocation2 + $0x120] sm:$0xff] %v355
  %460 = vst [vmem:[#allocation2 + $0x128] sm:$0xff] %v357
  %461 = vst [vmem:[#allocation2 + $0x130] sm:$0xff] %v359
  %462 = vst [vmem:[#allocation2 + $0x138] sm:$0xff] %v361
  %463 = vst [vmem:[#allocation2 + $0x140] sm:$0xff] %v365
  %464 = vst [vmem:[#allocation2 + $0x148] sm:$0xff] %v367
  %465 = vst [vmem:[#allocation2 + $0x150] sm:$0xff] %v369
  %466 = vst [vmem:[#allocation2 + $0x158] sm:$0xff] %v371
  %467 = vst [vmem:[#allocation2 + $0x160] sm:$0xff] %v375
  %468 = vst [vmem:[#allocation2 + $0x168] sm:$0xff] %v377
  %469 = vst [vmem:[#allocation2 + $0x170] sm:$0xff] %v379
  %470 = vst [vmem:[#allocation2 + $0x178] sm:$0xff] %v381
  %471 = vst [vmem:[#allocation2 + $0x180] sm:$0xff] %v385
  %472 = vst [vmem:[#allocation2 + $0x188] sm:$0xff] %v387
  %473 = vst [vmem:[#allocation2 + $0x190] sm:$0xff] %v389
  %474 = vst [vmem:[#allocation2 + $0x198] sm:$0xff] %v391
  %475 = vst [vmem:[#allocation2 + $0x1a0] sm:$0xff] %v395
  %476 = vst [vmem:[#allocation2 + $0x1a8] sm:$0xff] %v397
  %477 = vst [vmem:[#allocation2 + $0x1b0] sm:$0xff] %v399
  %478 = vst [vmem:[#allocation2 + $0x1b8] sm:$0xff] %v401
  %479 = vst [vmem:[#allocation2 + $0x1c0] sm:$0xff] %v405
  %480 = vst [vmem:[#allocation2 + $0x1c8] sm:$0xff] %v407
  %481 = vst [vmem:[#allocation2 + $0x1d0] sm:$0xff] %v409
  %482 = vst [vmem:[#allocation2 + $0x1d8] sm:$0xff] %v411
  %483 = vst [vmem:[#allocation2 + $0x1e0] sm:$0xff] %v415
  %484 = vst [vmem:[#allocation2 + $0x1e8] sm:$0xff] %v417
  %485 = vst [vmem:[#allocation2 + $0x1f0] sm:$0xff] %v419
  %486 = vst [vmem:[#allocation2 + $0x1f8] sm:$0xff] %v421
  %v487 = vld [vmem:[%s3] sm:$0xff]
  %v488 = vld [vmem:[%s3 + $0x8] sm:$0xff]
  %v489 = vld [vmem:[%s3 + $0x10] sm:$0xff]
  %v490 = vld [vmem:[%s3 + $0x18] sm:$0xff]
  %v491 = vld [vmem:[%s3 + $0x20] sm:$0xff]
  %v492 = vld [vmem:[%s3 + $0x28] sm:$0xff]
  %v493 = vld [vmem:[%s3 + $0x30] sm:$0xff]
  %v494 = vld [vmem:[%s3 + $0x38] sm:$0xff]
  %v495 = vld [vmem:[#allocation2] sm:$0xff]
  %v496 = vld [vmem:[#allocation2 + $0x8] sm:$0xff]
  %v497 = vld [vmem:[#allocation2 + $0x10] sm:$0xff]
  %v498 = vld [vmem:[#allocation2 + $0x18] sm:$0xff]
  %v507 = vunpack.c.l.b16 %v487
  %v508 = vunpack.c.h.b16 %v487
  %v509 = vunpack.c.l.b16 %v488
  %v510 = vunpack.c.h.b16 %v488
  %v511 = vunpack.c.l.b16 %v489
  %v512 = vunpack.c.h.b16 %v489
  %v513 = vunpack.c.l.b16 %v490
  %v514 = vunpack.c.h.b16 %v490
  %v515 = vunpack.c.l.b16 %v491
  %v516 = vunpack.c.h.b16 %v491
  %v517 = vunpack.c.l.b16 %v492
  %v518 = vunpack.c.h.b16 %v492
  %v519 = vunpack.c.l.b16 %v493
  %v520 = vunpack.c.h.b16 %v493
  %v521 = vunpack.c.l.b16 %v494
  %v522 = vunpack.c.h.b16 %v494
  %v523 = vpack.c.b16 %v509, %v507
  %v524 = vpack.c.b16 %v510, %v508
  %v525 = vpack.c.b16 %v513, %v511
  %v526 = vpack.c.b16 %v514, %v512
  %v527 = vpack.c.b16 %v517, %v515
  %v528 = vpack.c.b16 %v518, %v516
  %v529 = vpack.c.b16 %v521, %v519
  %v530 = vpack.c.b16 %v522, %v520
  %vm539 = vcmask 523264
  %v541 = vsel %vm539, 0, 0
  %543 = vmatprep.subr.bf16.mxu0 %v524
  %544 = vmatpush1.bf16.msra.mxu0 %v523
  %545 = vmatprep.subr.bf16.mxu0 %v526
  %546 = vmatpush1.bf16.msra.mxu0 %v525
  %547 = vmatprep.subr.bf16.mxu0 %v528
  %548 = vmatpush1.bf16.msra.mxu0 %v527
  %549 = vmatprep.subr.bf16.mxu0 %v530
  %550 = vmatpush1.bf16.msra.mxu0 %v529
  %551 = vmatprep.subr.bf16.mxu0 0
  %552 = vmatpush1.bf16.msra.mxu0 0
  %553 = vmatprep.subr.bf16.mxu0 0
  %554 = vmatpush1.bf16.msra.mxu0 0
  %555 = vmatprep.subr.bf16.mxu0 0
  %556 = vmatpush1.bf16.msra.mxu0 0
  %557 = vmatprep.subr.bf16.mxu0 0
  %558 = vmatpush1.bf16.msra.mxu0 0
  %559 = vmatprep.subr.bf16.mxu0 0
  %560 = vmatpush1.bf16.msra.mxu0 0
  %561 = vmatprep.subr.bf16.mxu0 0
  %562 = vmatpush1.bf16.msra.mxu0 0
  %563 = vmatprep.subr.bf16.mxu0 0
  %564 = vmatpush1.bf16.msra.mxu0 0
  %565 = vmatprep.subr.bf16.mxu0 0
  %566 = vmatpush1.bf16.msra.mxu0 0
  %567 = vmatprep.subr.bf16.mxu0 0
  %568 = vmatpush1.bf16.msra.mxu0 0
  %569 = vmatprep.subr.bf16.mxu0 0
  %570 = vmatpush1.bf16.msra.mxu0 0
  %571 = vmatprep.subr.bf16.mxu0 0
  %572 = vmatpush1.bf16.msra.mxu0 0
  %573 = vmatprep.subr.bf16.mxu0 0
  %574 = vmatpush1.bf16.msra.mxu0 0
  %575 = vmatprep.mubr.bf16.mxu0 0
  %576 = vmatmul.mubr.bf16.gmra.mrb[0].mxu0 %v541
  %v577 = vpop.f32.mrb[0].mxu0
  %v578 = vadd.f32 0.0, %v577
  %v579 = vpop.f32.mrb[0].mxu0
  %v580 = vadd.f32 0.0, %v579
  %v581 = vpop.f32.mrb[0].mxu0
  %v582 = vadd.f32 0.0, %v581
  %v583 = vpop.f32.mrb[0].mxu0
  %v584 = vadd.f32 0.0, %v583
  %585 = vdwg.mxu0
  %v586 = vadd.f32 %v495, %v578
  %v587 = vadd.f32 %v496, %v580
  %v588 = vadd.f32 %v497, %v582
  %v589 = vadd.f32 %v498, %v584
  %v590 = vmul.f32 %v586, 0.5
  %v591 = vmul.f32 %v587, 0.5
  %v592 = vmul.f32 %v588, 0.5
  %v593 = vmul.f32 %v589, 0.5
  %v594 = vtanh.pop %v590
  %v595 = vtanh.pop %v591
  %v596 = vtanh.pop %v592
  %v597 = vtanh.pop %v593
  %v598 = vmul.f32 %v594, 0.5
  %v599 = vmul.f32 %v595, 0.5
  %v600 = vmul.f32 %v596, 0.5
  %v601 = vmul.f32 %v597, 0.5
  %v602 = vadd.f32 %v598, 0.5
  %v603 = vadd.f32 %v599, 0.5
  %v604 = vadd.f32 %v600, 0.5
  %v605 = vadd.f32 %v601, 0.5
  %v606 = vtanh.pop %v587
  %v607 = vtanh.pop %v589
  %v608 = vmul.f32 %v602, 0.0
  %v609 = vmul.f32 %v604, 0.0
  %612 = vrot.lane.b32.xlu0 %v606, 64
  %v613 = vpop.permute.xlu0 %612
  %614 = vrot.lane.b32.xlu0 %v607, 64
  %v615 = vpop.permute.xlu0 %614
  %v618 = vmul.f32 %v602, %v613
  %v619 = vmul.f32 %v604, %v615
  %622 = vrot.lane.b32.xlu0 %v618, 64
  %v623 = vpop.permute.xlu0 %622
  %624 = vrot.lane.b32.xlu0 %v619, 64
  %v625 = vpop.permute.xlu0 %624
  %v628 = vadd.f32 %v608, %v623
  %v629 = vadd.f32 %v609, %v625
  %v630 = vtanh.pop %v628
  %v631 = vtanh.pop %v629
  %634 = vrot.lane.b32.xlu0 %v630, 64
  %v635 = vpop.permute.xlu0 %634
  %636 = vrot.lane.b32.xlu0 %v631, 64
  %v637 = vpop.permute.xlu0 %636
  %v640 = vmul.f32 %v603, %v635
  %v641 = vmul.f32 %v605, %v637
  %v642 = vld [vmem:[#allocation2 + $0x20] sm:$0xff]
  %v643 = vld [vmem:[#allocation2 + $0x28] sm:$0xff]
  %v644 = vld [vmem:[#allocation2 + $0x30] sm:$0xff]
  %v645 = vld [vmem:[#allocation2 + $0x38] sm:$0xff]
  %v646 = vpack.c.bf16 %v641, %v640
  %v648 = vsel %vm539, %v646, 0
  %650 = vmatprep.subr.bf16.mxu0 %v524
  %651 = vmatpush1.bf16.msra.mxu0 %v523
  %652 = vmatprep.subr.bf16.mxu0 %v526
  %653 = vmatpush1.bf16.msra.mxu0 %v525
  %654 = vmatprep.subr.bf16.mxu0 %v528
  %655 = vmatpush1.bf16.msra.mxu0 %v527
  %656 = vmatprep.subr.bf16.mxu0 %v530
  %657 = vmatpush1.bf16.msra.mxu0 %v529
  %658 = vmatprep.subr.bf16.mxu0 0
  %659 = vmatpush1.bf16.msra.mxu0 0
  %660 = vmatprep.subr.bf16.mxu0 0
  %661 = vmatpush1.bf16.msra.mxu0 0
  %662 = vmatprep.subr.bf16.mxu0 0
  %663 = vmatpush1.bf16.msra.mxu0 0
  %664 = vmatprep.subr.bf16.mxu0 0
  %665 = vmatpush1.bf16.msra.mxu0 0
  %666 = vmatprep.subr.bf16.mxu0 0
  %667 = vmatpush1.bf16.msra.mxu0 0
  %668 = vmatprep.subr.bf16.mxu0 0
  %669 = vmatpush1.bf16.msra.mxu0 0
  %670 = vmatprep.subr.bf16.mxu0 0
  %671 = vmatpush1.bf16.msra.mxu0 0
  %672 = vmatprep.subr.bf16.mxu0 0
  %673 = vmatpush1.bf16.msra.mxu0 0
  %674 = vmatprep.subr.bf16.mxu0 0
  %675 = vmatpush1.bf16.msra.mxu0 0
  %676 = vmatprep.subr.bf16.mxu0 0
  %677 = vmatpush1.bf16.msra.mxu0 0
  %678 = vmatprep.subr.bf16.mxu0 0
  %679 = vmatpush1.bf16.msra.mxu0 0
  %680 = vmatprep.subr.bf16.mxu0 0
  %681 = vmatpush1.bf16.msra.mxu0 0
  %682 = vmatprep.mubr.bf16.mxu0 0
  %683 = vmatmul.mubr.bf16.gmra.mrb[0].mxu0 %v648
  %v684 = vpop.f32.mrb[0].mxu0
  %v685 = vadd.f32 0.0, %v684
  %v686 = vpop.f32.mrb[0].mxu0
  %v687 = vadd.f32 0.0, %v686
  %v688 = vpop.f32.mrb[0].mxu0
  %v689 = vadd.f32 0.0, %v688
  %v690 = vpop.f32.mrb[0].mxu0
  %v691 = vadd.f32 0.0, %v690
  %692 = vdwg.mxu0
  %v693 = vadd.f32 %v642, %v685
  %v694 = vadd.f32 %v643, %v687
  %v695 = vadd.f32 %v644, %v689
  %v696 = vadd.f32 %v645, %v691
  %v697 = vmul.f32 %v693, 0.5
  %v698 = vmul.f32 %v694, 0.5
  %v699 = vmul.f32 %v695, 0.5
  %v700 = vmul.f32 %v696, 0.5
  %v701 = vtanh.pop %v697
  %v702 = vtanh.pop %v698
  %v703 = vtanh.pop %v699
  %v704 = vtanh.pop %v700
  %v705 = vmul.f32 %v701, 0.5
  %v706 = vmul.f32 %v702, 0.5
  %v707 = vmul.f32 %v703, 0.5
  %v708 = vmul.f32 %v704, 0.5
  %v709 = vadd.f32 %v705, 0.5
  %v710 = vadd.f32 %v706, 0.5
  %v711 = vadd.f32 %v707, 0.5
  %v712 = vadd.f32 %v708, 0.5
  %v713 = vtanh.pop %v694
  %v714 = vtanh.pop %v696
  %v715 = vmul.f32 %v709, %v628
  %v716 = vmul.f32 %v711, %v629
  %719 = vrot.lane.b32.xlu0 %v713, 64
  %v720 = vpop.permute.xlu0 %719
  %721 = vrot.lane.b32.xlu0 %v714, 64
  %v722 = vpop.permute.xlu0 %721
  %v725 = vmul.f32 %v709, %v720
  %v726 = vmul.f32 %v711, %v722
  %729 = vrot.lane.b32.xlu0 %v725, 64
  %v730 = vpop.permute.xlu0 %729
  %731 = vrot.lane.b32.xlu0 %v726, 64
  %v732 = vpop.permute.xlu0 %731
  %v735 = vadd.f32 %v715, %v730
  %v736 = vadd.f32 %v716, %v732
  %v737 = vtanh.pop %v735
  %v738 = vtanh.pop %v736
  %741 = vrot.lane.b32.xlu0 %v737, 64
  %v742 = vpop.permute.xlu0 %741
  %743 = vrot.lane.b32.xlu0 %v738, 64
  %v744 = vpop.permute.xlu0 %743
  %v747 = vmul.f32 %v710, %v742
  %v748 = vmul.f32 %v712, %v744
  %v749 = vld [vmem:[#allocation2 + $0x40] sm:$0xff]
  %v750 = vld [vmem:[#allocation2 + $0x48] sm:$0xff]
  %v751 = vld [vmem:[#allocation2 + $0x50] sm:$0xff]
  %v752 = vld [vmem:[#allocation2 + $0x58] sm:$0xff]
  %v753 = vpack.c.bf16 %v748, %v747
  %v755 = vsel %vm539, %v753, 0
  %757 = vmatprep.subr.bf16.mxu0 %v524
  %758 = vmatpush1.bf16.msra.mxu0 %v523
  %759 = vmatprep.subr.bf16.mxu0 %v526
  %760 = vmatpush1.bf16.msra.mxu0 %v525
  %761 = vmatprep.subr.bf16.mxu0 %v528
  %762 = vmatpush1.bf16.msra.mxu0 %v527
  %763 = vmatprep.subr.bf16.mxu0 %v530
  %764 = vmatpush1.bf16.msra.mxu0 %v529
  %765 = vmatprep.subr.bf16.mxu0 0
  %766 = vmatpush1.bf16.msra.mxu0 0
  %767 = vmatprep.subr.bf16.mxu0 0
  %768 = vmatpush1.bf16.msra.mxu0 0
  %769 = vmatprep.subr.bf16.mxu0 0
  %770 = vmatpush1.bf16.msra.mxu0 0
  %771 = vmatprep.subr.bf16.mxu0 0
  %772 = vmatpush1.bf16.msra.mxu0 0
  %773 = vmatprep.subr.bf16.mxu0 0
  %774 = vmatpush1.bf16.msra.mxu0 0
  %775 = vmatprep.subr.bf16.mxu0 0
  %776 = vmatpush1.bf16.msra.mxu0 0
  %777 = vmatprep.subr.bf16.mxu0 0
  %778 = vmatpush1.bf16.msra.mxu0 0
  %779 = vmatprep.subr.bf16.mxu0 0
  %780 = vmatpush1.bf16.msra.mxu0 0
  %781 = vmatprep.subr.bf16.mxu0 0
  %782 = vmatpush1.bf16.msra.mxu0 0
  %783 = vmatprep.subr.bf16.mxu0 0
  %784 = vmatpush1.bf16.msra.mxu0 0
  %785 = vmatprep.subr.bf16.mxu0 0
  %786 = vmatpush1.bf16.msra.mxu0 0
  %787 = vmatprep.subr.bf16.mxu0 0
  %788 = vmatpush1.bf16.msra.mxu0 0
  %789 = vmatprep.mubr.bf16.mxu0 0
  %790 = vmatmul.mubr.bf16.gmra.mrb[0].mxu0 %v755
  %v791 = vpop.f32.mrb[0].mxu0
  %v792 = vadd.f32 0.0, %v791
  %v793 = vpop.f32.mrb[0].mxu0
  %v794 = vadd.f32 0.0, %v793
  %v795 = vpop.f32.mrb[0].mxu0
  %v796 = vadd.f32 0.0, %v795
  %v797 = vpop.f32.mrb[0].mxu0
  %v798 = vadd.f32 0.0, %v797
  %799 = vdwg.mxu0
  %v800 = vadd.f32 %v749, %v792
  %v801 = vadd.f32 %v750, %v794
  %v802 = vadd.f32 %v751, %v796
  %v803 = vadd.f32 %v752, %v798
  %v804 = vmul.f32 %v800, 0.5
  %v805 = vmul.f32 %v801, 0.5
  %v806 = vmul.f32 %v802, 0.5
  %v807 = vmul.f32 %v803, 0.5
  %v808 = vtanh.pop %v804
  %v809 = vtanh.pop %v805
  %v810 = vtanh.pop %v806
  %v811 = vtanh.pop %v807
  %v812 = vmul.f32 %v808, 0.5
  %v813 = vmul.f32 %v809, 0.5
  %v814 = vmul.f32 %v810, 0.5
  %v815 = vmul.f32 %v811, 0.5
  %v816 = vadd.f32 %v812, 0.5
  %v817 = vadd.f32 %v813, 0.5
  %v818 = vadd.f32 %v814, 0.5
  %v819 = vadd.f32 %v815, 0.5
  %v820 = vtanh.pop %v801
  %v821 = vtanh.pop %v803
  %v822 = vmul.f32 %v816, %v735
  %v823 = vmul.f32 %v818, %v736
  %826 = vrot.lane.b32.xlu0 %v820, 64
  %v827 = vpop.permute.xlu0 %826
  %828 = vrot.lane.b32.xlu0 %v821, 64
  %v829 = vpop.permute.xlu0 %828
  %v832 = vmul.f32 %v816, %v827
  %v833 = vmul.f32 %v818, %v829
  %836 = vrot.lane.b32.xlu0 %v832, 64
  %v837 = vpop.permute.xlu0 %836
  %838 = vrot.lane.b32.xlu0 %v833, 64
  %v839 = vpop.permute.xlu0 %838
  %v842 = vadd.f32 %v822, %v837
  %v843 = vadd.f32 %v823, %v839
  %v844 = vtanh.pop %v842
  %v845 = vtanh.pop %v843
  %848 = vrot.lane.b32.xlu0 %v844, 64
  %v849 = vpop.permute.xlu0 %848
  %850 = vrot.lane.b32.xlu0 %v845, 64
  %v851 = vpop.permute.xlu0 %850
  %v854 = vmul.f32 %v817, %v849
  %v855 = vmul.f32 %v819, %v851
  %v856 = vld [vmem:[#allocation2 + $0x60] sm:$0xff]
  %v857 = vld [vmem:[#allocation2 + $0x68] sm:$0xff]
  %v858 = vld [vmem:[#allocation2 + $0x70] sm:$0xff]
  %v859 = vld [vmem:[#allocation2 + $0x78] sm:$0xff]
  %v860 = vpack.c.bf16 %v855, %v854
  %v862 = vsel %vm539, %v860, 0
  %864 = vmatprep.subr.bf16.mxu0 %v524
  %865 = vmatpush1.bf16.msra.mxu0 %v523
  %866 = vmatprep.subr.bf16.mxu0 %v526
  %867 = vmatpush1.bf16.msra.mxu0 %v525
  %868 = vmatprep.subr.bf16.mxu0 %v528
  %869 = vmatpush1.bf16.msra.mxu0 %v527
  %870 = vmatprep.subr.bf16.mxu0 %v530
  %871 = vmatpush1.bf16.msra.mxu0 %v529
  %872 = vmatprep.subr.bf16.mxu0 0
  %873 = vmatpush1.bf16.msra.mxu0 0
  %874 = vmatprep.subr.bf16.mxu0 0
  %875 = vmatpush1.bf16.msra.mxu0 0
  %876 = vmatprep.subr.bf16.mxu0 0
  %877 = vmatpush1.bf16.msra.mxu0 0
  %878 = vmatprep.subr.bf16.mxu0 0
  %879 = vmatpush1.bf16.msra.mxu0 0
  %880 = vmatprep.subr.bf16.mxu0 0
  %881 = vmatpush1.bf16.msra.mxu0 0
  %882 = vmatprep.subr.bf16.mxu0 0
  %883 = vmatpush1.bf16.msra.mxu0 0
  %884 = vmatprep.subr.bf16.mxu0 0
  %885 = vmatpush1.bf16.msra.mxu0 0
  %886 = vmatprep.subr.bf16.mxu0 0
  %887 = vmatpush1.bf16.msra.mxu0 0
  %888 = vmatprep.subr.bf16.mxu0 0
  %889 = vmatpush1.bf16.msra.mxu0 0
  %890 = vmatprep.subr.bf16.mxu0 0
  %891 = vmatpush1.bf16.msra.mxu0 0
  %892 = vmatprep.subr.bf16.mxu0 0
  %893 = vmatpush1.bf16.msra.mxu0 0
  %894 = vmatprep.subr.bf16.mxu0 0
  %895 = vmatpush1.bf16.msra.mxu0 0
  %896 = vmatprep.mubr.bf16.mxu0 0
  %897 = vmatmul.mubr.bf16.gmra.mrb[0].mxu0 %v862
  %v898 = vpop.f32.mrb[0].mxu0
  %v899 = vadd.f32 0.0, %v898
  %v900 = vpop.f32.mrb[0].mxu0
  %v901 = vadd.f32 0.0, %v900
  %v902 = vpop.f32.mrb[0].mxu0
  %v903 = vadd.f32 0.0, %v902
  %v904 = vpop.f32.mrb[0].mxu0
  %v905 = vadd.f32 0.0, %v904
  %906 = vdwg.mxu0
  %v907 = vadd.f32 %v856, %v899
  %v908 = vadd.f32 %v857, %v901
  %v909 = vadd.f32 %v858, %v903
  %v910 = vadd.f32 %v859, %v905
  %v911 = vmul.f32 %v907, 0.5
  %v912 = vmul.f32 %v908, 0.5
  %v913 = vmul.f32 %v909, 0.5
  %v914 = vmul.f32 %v910, 0.5
  %v915 = vtanh.pop %v911
  %v916 = vtanh.pop %v912
  %v917 = vtanh.pop %v913
  %v918 = vtanh.pop %v914
  %v919 = vmul.f32 %v915, 0.5
  %v920 = vmul.f32 %v916, 0.5
  %v921 = vmul.f32 %v917, 0.5
  %v922 = vmul.f32 %v918, 0.5
  %v923 = vadd.f32 %v919, 0.5
  %v924 = vadd.f32 %v920, 0.5
  %v925 = vadd.f32 %v921, 0.5
  %v926 = vadd.f32 %v922, 0.5
  %v927 = vtanh.pop %v908
  %v928 = vtanh.pop %v910
  %v929 = vmul.f32 %v923, %v842
  %v930 = vmul.f32 %v925, %v843
  %933 = vrot.lane.b32.xlu0 %v927, 64
  %v934 = vpop.permute.xlu0 %933
  %935 = vrot.lane.b32.xlu0 %v928, 64
  %v936 = vpop.permute.xlu0 %935
  %v939 = vmul.f32 %v923, %v934
  %v940 = vmul.f32 %v925, %v936
  %943 = vrot.lane.b32.xlu0 %v939, 64
  %v944 = vpop.permute.xlu0 %943
  %945 = vrot.lane.b32.xlu0 %v940, 64
  %v946 = vpop.permute.xlu0 %945
  %v949 = vadd.f32 %v929, %v944
  %v950 = vadd.f32 %v930, %v946
  %v951 = vtanh.pop %v949
  %v952 = vtanh.pop %v950
  %955 = vrot.lane.b32.xlu0 %v951, 64
  %v956 = vpop.permute.xlu0 %955
  %957 = vrot.lane.b32.xlu0 %v952, 64
  %v958 = vpop.permute.xlu0 %957
  %v961 = vmul.f32 %v924, %v956
  %v962 = vmul.f32 %v926, %v958
  %v963 = vld [vmem:[#allocation2 + $0x80] sm:$0xff]
  %v964 = vld [vmem:[#allocation2 + $0x88] sm:$0xff]
  %v965 = vld [vmem:[#allocation2 + $0x90] sm:$0xff]
  %v966 = vld [vmem:[#allocation2 + $0x98] sm:$0xff]
  %v967 = vpack.c.bf16 %v962, %v961
  %v969 = vsel %vm539, %v967, 0
  %971 = vmatprep.subr.bf16.mxu0 %v524
  %972 = vmatpush1.bf16.msra.mxu0 %v523
  %973 = vmatprep.subr.bf16.mxu0 %v526
  %974 = vmatpush1.bf16.msra.mxu0 %v525
  %975 = vmatprep.subr.bf16.mxu0 %v528
  %976 = vmatpush1.bf16.msra.mxu0 %v527
  %977 = vmatprep.subr.bf16.mxu0 %v530
  %978 = vmatpush1.bf16.msra.mxu0 %v529
  %979 = vmatprep.subr.bf16.mxu0 0
  %980 = vmatpush1.bf16.msra.mxu0 0
  %981 = vmatprep.subr.bf16.mxu0 0
  %982 = vmatpush1.bf16.msra.mxu0 0
  %983 = vmatprep.subr.bf16.mxu0 0
  %984 = vmatpush1.bf16.msra.mxu0 0
  %985 = vmatprep.subr.bf16.mxu0 0
  %986 = vmatpush1.bf16.msra.mxu0 0
  %987 = vmatprep.subr.bf16.mxu0 0
  %988 = vmatpush1.bf16.msra.mxu0 0
  %989 = vmatprep.subr.bf16.mxu0 0
  %990 = vmatpush1.bf16.msra.mxu0 0
  %991 = vmatprep.subr.bf16.mxu0 0
  %992 = vmatpush1.bf16.msra.mxu0 0
  %993 = vmatprep.subr.bf16.mxu0 0
  %994 = vmatpush1.bf16.msra.mxu0 0
  %995 = vmatprep.subr.bf16.mxu0 0
  %996 = vmatpush1.bf16.msra.mxu0 0
  %997 = vmatprep.subr.bf16.mxu0 0
  %998 = vmatpush1.bf16.msra.mxu0 0
  %999 = vmatprep.subr.bf16.mxu0 0
  %1000 = vmatpush1.bf16.msra.mxu0 0
  %1001 = vmatprep.subr.bf16.mxu0 0
  %1002 = vmatpush1.bf16.msra.mxu0 0
  %1003 = vmatprep.mubr.bf16.mxu0 0
  %1004 = vmatmul.mubr.bf16.gmra.mrb[0].mxu0 %v969
  %v1005 = vpop.f32.mrb[0].mxu0
  %v1006 = vadd.f32 0.0, %v1005
  %v1007 = vpop.f32.mrb[0].mxu0
  %v1008 = vadd.f32 0.0, %v1007
  %v1009 = vpop.f32.mrb[0].mxu0
  %v1010 = vadd.f32 0.0, %v1009
  %v1011 = vpop.f32.mrb[0].mxu0
  %v1012 = vadd.f32 0.0, %v1011
  %1013 = vdwg.mxu0
  %v1014 = vadd.f32 %v963, %v1006
  %v1015 = vadd.f32 %v964, %v1008
  %v1016 = vadd.f32 %v965, %v1010
  %v1017 = vadd.f32 %v966, %v1012
  %v1018 = vmul.f32 %v1014, 0.5
  %v1019 = vmul.f32 %v1015, 0.5
  %v1020 = vmul.f32 %v1016, 0.5
  %v1021 = vmul.f32 %v1017, 0.5
  %v1022 = vtanh.pop %v1018
  %v1023 = vtanh.pop %v1019
  %v1024 = vtanh.pop %v1020
  %v1025 = vtanh.pop %v1021
  %v1026 = vmul.f32 %v1022, 0.5
  %v1027 = vmul.f32 %v1023, 0.5
  %v1028 = vmul.f32 %v1024, 0.5
  %v1029 = vmul.f32 %v1025, 0.5
  %v1030 = vadd.f32 %v1026, 0.5
  %v1031 = vadd.f32 %v1027, 0.5
  %v1032 = vadd.f32 %v1028, 0.5
  %v1033 = vadd.f32 %v1029, 0.5
  %v1034 = vtanh.pop %v1015
  %v1035 = vtanh.pop %v1017
  %v1036 = vmul.f32 %v1030, %v949
  %v1037 = vmul.f32 %v1032, %v950
  %1040 = vrot.lane.b32.xlu0 %v1034, 64
  %v1041 = vpop.permute.xlu0 %1040
  %1042 = vrot.lane.b32.xlu0 %v1035, 64
  %v1043 = vpop.permute.xlu0 %1042
  %v1046 = vmul.f32 %v1030, %v1041
  %v1047 = vmul.f32 %v1032, %v1043
  %1050 = vrot.lane.b32.xlu0 %v1046, 64
  %v1051 = vpop.permute.xlu0 %1050
  %1052 = vrot.lane.b32.xlu0 %v1047, 64
  %v1053 = vpop.permute.xlu0 %1052
  %v1056 = vadd.f32 %v1036, %v1051
  %v1057 = vadd.f32 %v1037, %v1053
  %v1058 = vtanh.pop %v1056
  %v1059 = vtanh.pop %v1057
  %1062 = vrot.lane.b32.xlu0 %v1058, 64
  %v1063 = vpop.permute.xlu0 %1062
  %1064 = vrot.lane.b32.xlu0 %v1059, 64
  %v1065 = vpop.permute.xlu0 %1064
  %v1068 = vmul.f32 %v1031, %v1063
  %v1069 = vmul.f32 %v1033, %v1065
  %v1070 = vld [vmem:[#allocation2 + $0xa0] sm:$0xff]
  %v1071 = vld [vmem:[#allocation2 + $0xa8] sm:$0xff]
  %v1072 = vld [vmem:[#allocation2 + $0xb0] sm:$0xff]
  %v1073 = vld [vmem:[#allocation2 + $0xb8] sm:$0xff]
  %v1074 = vpack.c.bf16 %v1069, %v1068
  %v1076 = vsel %vm539, %v1074, 0
  %1078 = vmatprep.subr.bf16.mxu0 %v524
  %1079 = vmatpush1.bf16.msra.mxu0 %v523
  %1080 = vmatprep.subr.bf16.mxu0 %v526
  %1081 = vmatpush1.bf16.msra.mxu0 %v525
  %1082 = vmatprep.subr.bf16.mxu0 %v528
  %1083 = vmatpush1.bf16.msra.mxu0 %v527
  %1084 = vmatprep.subr.bf16.mxu0 %v530
  %1085 = vmatpush1.bf16.msra.mxu0 %v529
  %1086 = vmatprep.subr.bf16.mxu0 0
  %1087 = vmatpush1.bf16.msra.mxu0 0
  %1088 = vmatprep.subr.bf16.mxu0 0
  %1089 = vmatpush1.bf16.msra.mxu0 0
  %1090 = vmatprep.subr.bf16.mxu0 0
  %1091 = vmatpush1.bf16.msra.mxu0 0
  %1092 = vmatprep.subr.bf16.mxu0 0
  %1093 = vmatpush1.bf16.msra.mxu0 0
  %1094 = vmatprep.subr.bf16.mxu0 0
  %1095 = vmatpush1.bf16.msra.mxu0 0
  %1096 = vmatprep.subr.bf16.mxu0 0
  %1097 = vmatpush1.bf16.msra.mxu0 0
  %1098 = vmatprep.subr.bf16.mxu0 0
  %1099 = vmatpush1.bf16.msra.mxu0 0
  %1100 = vmatprep.subr.bf16.mxu0 0
  %1101 = vmatpush1.bf16.msra.mxu0 0
  %1102 = vmatprep.subr.bf16.mxu0 0
  %1103 = vmatpush1.bf16.msra.mxu0 0
  %1104 = vmatprep.subr.bf16.mxu0 0
  %1105 = vmatpush1.bf16.msra.mxu0 0
  %1106 = vmatprep.subr.bf16.mxu0 0
  %1107 = vmatpush1.bf16.msra.mxu0 0
  %1108 = vmatprep.subr.bf16.mxu0 0
  %1109 = vmatpush1.bf16.msra.mxu0 0
  %1110 = vmatprep.mubr.bf16.mxu0 0
  %1111 = vmatmul.mubr.bf16.gmra.mrb[0].mxu0 %v1076
  %v1112 = vpop.f32.mrb[0].mxu0
  %v1113 = vadd.f32 0.0, %v1112
  %v1114 = vpop.f32.mrb[0].mxu0
  %v1115 = vadd.f32 0.0, %v1114
  %v1116 = vpop.f32.mrb[0].mxu0
  %v1117 = vadd.f32 0.0, %v1116
  %v1118 = vpop.f32.mrb[0].mxu0
  %v1119 = vadd.f32 0.0, %v1118
  %1120 = vdwg.mxu0
  %v1121 = vadd.f32 %v1070, %v1113
  %v1122 = vadd.f32 %v1071, %v1115
  %v1123 = vadd.f32 %v1072, %v1117
  %v1124 = vadd.f32 %v1073, %v1119
  %v1125 = vmul.f32 %v1121, 0.5
  %v1126 = vmul.f32 %v1122, 0.5
  %v1127 = vmul.f32 %v1123, 0.5
  %v1128 = vmul.f32 %v1124, 0.5
  %v1129 = vtanh.pop %v1125
  %v1130 = vtanh.pop %v1126
  %v1131 = vtanh.pop %v1127
  %v1132 = vtanh.pop %v1128
  %v1133 = vmul.f32 %v1129, 0.5
  %v1134 = vmul.f32 %v1130, 0.5
  %v1135 = vmul.f32 %v1131, 0.5
  %v1136 = vmul.f32 %v1132, 0.5
  %v1137 = vadd.f32 %v1133, 0.5
  %v1138 = vadd.f32 %v1134, 0.5
  %v1139 = vadd.f32 %v1135, 0.5
  %v1140 = vadd.f32 %v1136, 0.5
  %v1141 = vtanh.pop %v1122
  %v1142 = vtanh.pop %v1124
  %v1143 = vmul.f32 %v1137, %v1056
  %v1144 = vmul.f32 %v1139, %v1057
  %1147 = vrot.lane.b32.xlu0 %v1141, 64
  %v1148 = vpop.permute.xlu0 %1147
  %1149 = vrot.lane.b32.xlu0 %v1142, 64
  %v1150 = vpop.permute.xlu0 %1149
  %v1153 = vmul.f32 %v1137, %v1148
  %v1154 = vmul.f32 %v1139, %v1150
  %1157 = vrot.lane.b32.xlu0 %v1153, 64
  %v1158 = vpop.permute.xlu0 %1157
  %1159 = vrot.lane.b32.xlu0 %v1154, 64
  %v1160 = vpop.permute.xlu0 %1159
  %v1163 = vadd.f32 %v1143, %v1158
  %v1164 = vadd.f32 %v1144, %v1160
  %v1165 = vtanh.pop %v1163
  %v1166 = vtanh.pop %v1164
  %1169 = vrot.lane.b32.xlu0 %v1165, 64
  %v1170 = vpop.permute.xlu0 %1169
  %1171 = vrot.lane.b32.xlu0 %v1166, 64
  %v1172 = vpop.permute.xlu0 %1171
  %v1175 = vmul.f32 %v1138, %v1170
  %v1176 = vmul.f32 %v1140, %v1172
  %v1177 = vld [vmem:[#allocation2 + $0xc0] sm:$0xff]
  %v1178 = vld [vmem:[#allocation2 + $0xc8] sm:$0xff]
  %v1179 = vld [vmem:[#allocation2 + $0xd0] sm:$0xff]
  %v1180 = vld [vmem:[#allocation2 + $0xd8] sm:$0xff]
  %v1181 = vpack.c.bf16 %v1176, %v1175
  %v1183 = vsel %vm539, %v1181, 0
  %1185 = vmatprep.subr.bf16.mxu0 %v524
  %1186 = vmatpush1.bf16.msra.mxu0 %v523
  %1187 = vmatprep.subr.bf16.mxu0 %v526
  %1188 = vmatpush1.bf16.msra.mxu0 %v525
  %1189 = vmatprep.subr.bf16.mxu0 %v528
  %1190 = vmatpush1.bf16.msra.mxu0 %v527
  %1191 = vmatprep.subr.bf16.mxu0 %v530
  %1192 = vmatpush1.bf16.msra.mxu0 %v529
  %1193 = vmatprep.subr.bf16.mxu0 0
  %1194 = vmatpush1.bf16.msra.mxu0 0
  %1195 = vmatprep.subr.bf16.mxu0 0
  %1196 = vmatpush1.bf16.msra.mxu0 0
  %1197 = vmatprep.subr.bf16.mxu0 0
  %1198 = vmatpush1.bf16.msra.mxu0 0
  %1199 = vmatprep.subr.bf16.mxu0 0
  %1200 = vmatpush1.bf16.msra.mxu0 0
  %1201 = vmatprep.subr.bf16.mxu0 0
  %1202 = vmatpush1.bf16.msra.mxu0 0
  %1203 = vmatprep.subr.bf16.mxu0 0
  %1204 = vmatpush1.bf16.msra.mxu0 0
  %1205 = vmatprep.subr.bf16.mxu0 0
  %1206 = vmatpush1.bf16.msra.mxu0 0
  %1207 = vmatprep.subr.bf16.mxu0 0
  %1208 = vmatpush1.bf16.msra.mxu0 0
  %1209 = vmatprep.subr.bf16.mxu0 0
  %1210 = vmatpush1.bf16.msra.mxu0 0
  %1211 = vmatprep.subr.bf16.mxu0 0
  %1212 = vmatpush1.bf16.msra.mxu0 0
  %1213 = vmatprep.subr.bf16.mxu0 0
  %1214 = vmatpush1.bf16.msra.mxu0 0
  %1215 = vmatprep.subr.bf16.mxu0 0
  %1216 = vmatpush1.bf16.msra.mxu0 0
  %1217 = vmatprep.mubr.bf16.mxu0 0
  %1218 = vmatmul.mubr.bf16.gmra.mrb[0].mxu0 %v1183
  %v1219 = vpop.f32.mrb[0].mxu0
  %v1220 = vadd.f32 0.0, %v1219
  %v1221 = vpop.f32.mrb[0].mxu0
  %v1222 = vadd.f32 0.0, %v1221
  %v1223 = vpop.f32.mrb[0].mxu0
  %v1224 = vadd.f32 0.0, %v1223
  %v1225 = vpop.f32.mrb[0].mxu0
  %v1226 = vadd.f32 0.0, %v1225
  %1227 = vdwg.mxu0
  %v1228 = vadd.f32 %v1177, %v1220
  %v1229 = vadd.f32 %v1178, %v1222
  %v1230 = vadd.f32 %v1179, %v1224
  %v1231 = vadd.f32 %v1180, %v1226
  %v1232 = vmul.f32 %v1228, 0.5
  %v1233 = vmul.f32 %v1229, 0.5
  %v1234 = vmul.f32 %v1230, 0.5
  %v1235 = vmul.f32 %v1231, 0.5
  %v1236 = vtanh.pop %v1232
  %v1237 = vtanh.pop %v1233
  %v1238 = vtanh.pop %v1234
  %v1239 = vtanh.pop %v1235
  %v1240 = vmul.f32 %v1236, 0.5
  %v1241 = vmul.f32 %v1237, 0.5
  %v1242 = vmul.f32 %v1238, 0.5
  %v1243 = vmul.f32 %v1239, 0.5
  %v1244 = vadd.f32 %v1240, 0.5
  %v1245 = vadd.f32 %v1241, 0.5
  %v1246 = vadd.f32 %v1242, 0.5
  %v1247 = vadd.f32 %v1243, 0.5
  %v1248 = vtanh.pop %v1229
  %v1249 = vtanh.pop %v1231
  %v1250 = vmul.f32 %v1244, %v1163
  %v1251 = vmul.f32 %v1246, %v1164
  %1254 = vrot.lane.b32.xlu0 %v1248, 64
  %v1255 = vpop.permute.xlu0 %1254
  %1256 = vrot.lane.b32.xlu0 %v1249, 64
  %v1257 = vpop.permute.xlu0 %1256
  %v1260 = vmul.f32 %v1244, %v1255
  %v1261 = vmul.f32 %v1246, %v1257
  %1264 = vrot.lane.b32.xlu0 %v1260, 64
  %v1265 = vpop.permute.xlu0 %1264
  %1266 = vrot.lane.b32.xlu0 %v1261, 64
  %v1267 = vpop.permute.xlu0 %1266
  %v1270 = vadd.f32 %v1250, %v1265
  %v1271 = vadd.f32 %v1251, %v1267
  %v1272 = vtanh.pop %v1270
  %v1273 = vtanh.pop %v1271
  %1276 = vrot.lane.b32.xlu0 %v1272, 64
  %v1277 = vpop.permute.xlu0 %1276
  %1278 = vrot.lane.b32.xlu0 %v1273, 64
  %v1279 = vpop.permute.xlu0 %1278
  %v1282 = vmul.f32 %v1245, %v1277
  %v1283 = vmul.f32 %v1247, %v1279
  %v1284 = vld [vmem:[#allocation2 + $0xe0] sm:$0xff]
  %v1285 = vld [vmem:[#allocation2 + $0xe8] sm:$0xff]
  %v1286 = vld [vmem:[#allocation2 + $0xf0] sm:$0xff]
  %v1287 = vld [vmem:[#allocation2 + $0xf8] sm:$0xff]
  %v1288 = vpack.c.bf16 %v1283, %v1282
  %v1290 = vsel %vm539, %v1288, 0
  %1292 = vmatprep.subr.bf16.mxu0 %v524
  %1293 = vmatpush1.bf16.msra.mxu0 %v523
  %1294 = vmatprep.subr.bf16.mxu0 %v526
  %1295 = vmatpush1.bf16.msra.mxu0 %v525
  %1296 = vmatprep.subr.bf16.mxu0 %v528
  %1297 = vmatpush1.bf16.msra.mxu0 %v527
  %1298 = vmatprep.subr.bf16.mxu0 %v530
  %1299 = vmatpush1.bf16.msra.mxu0 %v529
  %1300 = vmatprep.subr.bf16.mxu0 0
  %1301 = vmatpush1.bf16.msra.mxu0 0
  %1302 = vmatprep.subr.bf16.mxu0 0
  %1303 = vmatpush1.bf16.msra.mxu0 0
  %1304 = vmatprep.subr.bf16.mxu0 0
  %1305 = vmatpush1.bf16.msra.mxu0 0
  %1306 = vmatprep.subr.bf16.mxu0 0
  %1307 = vmatpush1.bf16.msra.mxu0 0
  %1308 = vmatprep.subr.bf16.mxu0 0
  %1309 = vmatpush1.bf16.msra.mxu0 0
  %1310 = vmatprep.subr.bf16.mxu0 0
  %1311 = vmatpush1.bf16.msra.mxu0 0
  %1312 = vmatprep.subr.bf16.mxu0 0
  %1313 = vmatpush1.bf16.msra.mxu0 0
  %1314 = vmatprep.subr.bf16.mxu0 0
  %1315 = vmatpush1.bf16.msra.mxu0 0
  %1316 = vmatprep.subr.bf16.mxu0 0
  %1317 = vmatpush1.bf16.msra.mxu0 0
  %1318 = vmatprep.subr.bf16.mxu0 0
  %1319 = vmatpush1.bf16.msra.mxu0 0
  %1320 = vmatprep.subr.bf16.mxu0 0
  %1321 = vmatpush1.bf16.msra.mxu0 0
  %1322 = vmatprep.subr.bf16.mxu0 0
  %1323 = vmatpush1.bf16.msra.mxu0 0
  %1324 = vmatprep.mubr.bf16.mxu0 0
  %1325 = vmatmul.mubr.bf16.gmra.mrb[0].mxu0 %v1290
  %v1326 = vpop.f32.mrb[0].mxu0
  %v1327 = vadd.f32 0.0, %v1326
  %v1328 = vpop.f32.mrb[0].mxu0
  %v1329 = vadd.f32 0.0, %v1328
  %v1330 = vpop.f32.mrb[0].mxu0
  %v1331 = vadd.f32 0.0, %v1330
  %v1332 = vpop.f32.mrb[0].mxu0
  %v1333 = vadd.f32 0.0, %v1332
  %1334 = vdwg.mxu0
  %v1335 = vadd.f32 %v1284, %v1327
  %v1336 = vadd.f32 %v1285, %v1329
  %v1337 = vadd.f32 %v1286, %v1331
  %v1338 = vadd.f32 %v1287, %v1333
  %v1339 = vmul.f32 %v1335, 0.5
  %v1340 = vmul.f32 %v1336, 0.5
  %v1341 = vmul.f32 %v1337, 0.5
  %v1342 = vmul.f32 %v1338, 0.5
  %v1343 = vtanh.pop %v1339
  %v1344 = vtanh.pop %v1340
  %v1345 = vtanh.pop %v1341
  %v1346 = vtanh.pop %v1342
  %v1347 = vmul.f32 %v1343, 0.5
  %v1348 = vmul.f32 %v1344, 0.5
  %v1349 = vmul.f32 %v1345, 0.5
  %v1350 = vmul.f32 %v1346, 0.5
  %v1351 = vadd.f32 %v1347, 0.5
  %v1352 = vadd.f32 %v1348, 0.5
  %v1353 = vadd.f32 %v1349, 0.5
  %v1354 = vadd.f32 %v1350, 0.5
  %v1355 = vtanh.pop %v1336
  %v1356 = vtanh.pop %v1338
  %v1357 = vmul.f32 %v1351, %v1270
  %v1358 = vmul.f32 %v1353, %v1271
  %1361 = vrot.lane.b32.xlu0 %v1355, 64
  %v1362 = vpop.permute.xlu0 %1361
  %1363 = vrot.lane.b32.xlu0 %v1356, 64
  %v1364 = vpop.permute.xlu0 %1363
  %v1367 = vmul.f32 %v1351, %v1362
  %v1368 = vmul.f32 %v1353, %v1364
  %1371 = vrot.lane.b32.xlu0 %v1367, 64
  %v1372 = vpop.permute.xlu0 %1371
  %1373 = vrot.lane.b32.xlu0 %v1368, 64
  %v1374 = vpop.permute.xlu0 %1373
  %v1377 = vadd.f32 %v1357, %v1372
  %v1378 = vadd.f32 %v1358, %v1374
  %v1379 = vtanh.pop %v1377
  %v1380 = vtanh.pop %v1378
  %1383 = vrot.lane.b32.xlu0 %v1379, 64
  %v1384 = vpop.permute.xlu0 %1383
  %1385 = vrot.lane.b32.xlu0 %v1380, 64
  %v1386 = vpop.permute.xlu0 %1385
  %v1389 = vmul.f32 %v1352, %v1384
  %v1390 = vmul.f32 %v1354, %v1386
  %v1391 = vld [vmem:[#allocation2 + $0x100] sm:$0xff]
  %v1392 = vld [vmem:[#allocation2 + $0x108] sm:$0xff]
  %v1393 = vld [vmem:[#allocation2 + $0x110] sm:$0xff]
  %v1394 = vld [vmem:[#allocation2 + $0x118] sm:$0xff]
  %v1395 = vpack.c.bf16 %v1390, %v1389
  %v1397 = vsel %vm539, %v1395, 0
  %1399 = vmatprep.subr.bf16.mxu0 %v524
  %1400 = vmatpush1.bf16.msra.mxu0 %v523
  %1401 = vmatprep.subr.bf16.mxu0 %v526
  %1402 = vmatpush1.bf16.msra.mxu0 %v525
  %1403 = vmatprep.subr.bf16.mxu0 %v528
  %1404 = vmatpush1.bf16.msra.mxu0 %v527
  %1405 = vmatprep.subr.bf16.mxu0 %v530
  %1406 = vmatpush1.bf16.msra.mxu0 %v529
  %1407 = vmatprep.subr.bf16.mxu0 0
  %1408 = vmatpush1.bf16.msra.mxu0 0
  %1409 = vmatprep.subr.bf16.mxu0 0
  %1410 = vmatpush1.bf16.msra.mxu0 0
  %1411 = vmatprep.subr.bf16.mxu0 0
  %1412 = vmatpush1.bf16.msra.mxu0 0
  %1413 = vmatprep.subr.bf16.mxu0 0
  %1414 = vmatpush1.bf16.msra.mxu0 0
  %1415 = vmatprep.subr.bf16.mxu0 0
  %1416 = vmatpush1.bf16.msra.mxu0 0
  %1417 = vmatprep.subr.bf16.mxu0 0
  %1418 = vmatpush1.bf16.msra.mxu0 0
  %1419 = vmatprep.subr.bf16.mxu0 0
  %1420 = vmatpush1.bf16.msra.mxu0 0
  %1421 = vmatprep.subr.bf16.mxu0 0
  %1422 = vmatpush1.bf16.msra.mxu0 0
  %1423 = vmatprep.subr.bf16.mxu0 0
  %1424 = vmatpush1.bf16.msra.mxu0 0
  %1425 = vmatprep.subr.bf16.mxu0 0
  %1426 = vmatpush1.bf16.msra.mxu0 0
  %1427 = vmatprep.subr.bf16.mxu0 0
  %1428 = vmatpush1.bf16.msra.mxu0 0
  %1429 = vmatprep.subr.bf16.mxu0 0
  %1430 = vmatpush1.bf16.msra.mxu0 0
  %1431 = vmatprep.mubr.bf16.mxu0 0
  %1432 = vmatmul.mubr.bf16.gmra.mrb[0].mxu0 %v1397
  %v1433 = vpop.f32.mrb[0].mxu0
  %v1434 = vadd.f32 0.0, %v1433
  %v1435 = vpop.f32.mrb[0].mxu0
  %v1436 = vadd.f32 0.0, %v1435
  %v1437 = vpop.f32.mrb[0].mxu0
  %v1438 = vadd.f32 0.0, %v1437
  %v1439 = vpop.f32.mrb[0].mxu0
  %v1440 = vadd.f32 0.0, %v1439
  %1441 = vdwg.mxu0
  %v1442 = vadd.f32 %v1391, %v1434
  %v1443 = vadd.f32 %v1392, %v1436
  %v1444 = vadd.f32 %v1393, %v1438
  %v1445 = vadd.f32 %v1394, %v1440
  %v1446 = vmul.f32 %v1442, 0.5
  %v1447 = vmul.f32 %v1443, 0.5
  %v1448 = vmul.f32 %v1444, 0.5
  %v1449 = vmul.f32 %v1445, 0.5
  %v1450 = vtanh.pop %v1446
  %v1451 = vtanh.pop %v1447
  %v1452 = vtanh.pop %v1448
  %v1453 = vtanh.pop %v1449
  %v1454 = vmul.f32 %v1450, 0.5
  %v1455 = vmul.f32 %v1451, 0.5
  %v1456 = vmul.f32 %v1452, 0.5
  %v1457 = vmul.f32 %v1453, 0.5
  %v1458 = vadd.f32 %v1454, 0.5
  %v1459 = vadd.f32 %v1455, 0.5
  %v1460 = vadd.f32 %v1456, 0.5
  %v1461 = vadd.f32 %v1457, 0.5
  %v1462 = vtanh.pop %v1443
  %v1463 = vtanh.pop %v1445
  %v1464 = vmul.f32 %v1458, %v1377
  %v1465 = vmul.f32 %v1460, %v1378
  %1468 = vrot.lane.b32.xlu0 %v1462, 64
  %v1469 = vpop.permute.xlu0 %1468
  %1470 = vrot.lane.b32.xlu0 %v1463, 64
  %v1471 = vpop.permute.xlu0 %1470
  %v1474 = vmul.f32 %v1458, %v1469
  %v1475 = vmul.f32 %v1460, %v1471
  %1478 = vrot.lane.b32.xlu0 %v1474, 64
  %v1479 = vpop.permute.xlu0 %1478
  %1480 = vrot.lane.b32.xlu0 %v1475, 64
  %v1481 = vpop.permute.xlu0 %1480
  %v1484 = vadd.f32 %v1464, %v1479
  %v1485 = vadd.f32 %v1465, %v1481
  %v1486 = vtanh.pop %v1484
  %v1487 = vtanh.pop %v1485
  %1490 = vrot.lane.b32.xlu0 %v1486, 64
  %v1491 = vpop.permute.xlu0 %1490
  %1492 = vrot.lane.b32.xlu0 %v1487, 64
  %v1493 = vpop.permute.xlu0 %1492
  %v1496 = vmul.f32 %v1459, %v1491
  %v1497 = vmul.f32 %v1461, %v1493
  %v1498 = vld [vmem:[#allocation2 + $0x120] sm:$0xff]
  %v1499 = vld [vmem:[#allocation2 + $0x128] sm:$0xff]
  %v1500 = vld [vmem:[#allocation2 + $0x130] sm:$0xff]
  %v1501 = vld [vmem:[#allocation2 + $0x138] sm:$0xff]
  %v1502 = vpack.c.bf16 %v1497, %v1496
  %v1504 = vsel %vm539, %v1502, 0
  %1506 = vmatprep.subr.bf16.mxu0 %v524
  %1507 = vmatpush1.bf16.msra.mxu0 %v523
  %1508 = vmatprep.subr.bf16.mxu0 %v526
  %1509 = vmatpush1.bf16.msra.mxu0 %v525
  %1510 = vmatprep.subr.bf16.mxu0 %v528
  %1511 = vmatpush1.bf16.msra.mxu0 %v527
  %1512 = vmatprep.subr.bf16.mxu0 %v530
  %1513 = vmatpush1.bf16.msra.mxu0 %v529
  %1514 = vmatprep.subr.bf16.mxu0 0
  %1515 = vmatpush1.bf16.msra.mxu0 0
  %1516 = vmatprep.subr.bf16.mxu0 0
  %1517 = vmatpush1.bf16.msra.mxu0 0
  %1518 = vmatprep.subr.bf16.mxu0 0
  %1519 = vmatpush1.bf16.msra.mxu0 0
  %1520 = vmatprep.subr.bf16.mxu0 0
  %1521 = vmatpush1.bf16.msra.mxu0 0
  %1522 = vmatprep.subr.bf16.mxu0 0
  %1523 = vmatpush1.bf16.msra.mxu0 0
  %1524 = vmatprep.subr.bf16.mxu0 0
  %1525 = vmatpush1.bf16.msra.mxu0 0
  %1526 = vmatprep.subr.bf16.mxu0 0
  %1527 = vmatpush1.bf16.msra.mxu0 0
  %1528 = vmatprep.subr.bf16.mxu0 0
  %1529 = vmatpush1.bf16.msra.mxu0 0
  %1530 = vmatprep.subr.bf16.mxu0 0
  %1531 = vmatpush1.bf16.msra.mxu0 0
  %1532 = vmatprep.subr.bf16.mxu0 0
  %1533 = vmatpush1.bf16.msra.mxu0 0
  %1534 = vmatprep.subr.bf16.mxu0 0
  %1535 = vmatpush1.bf16.msra.mxu0 0
  %1536 = vmatprep.subr.bf16.mxu0 0
  %1537 = vmatpush1.bf16.msra.mxu0 0
  %1538 = vmatprep.mubr.bf16.mxu0 0
  %1539 = vmatmul.mubr.bf16.gmra.mrb[0].mxu0 %v1504
  %v1540 = vpop.f32.mrb[0].mxu0
  %v1541 = vadd.f32 0.0, %v1540
  %v1542 = vpop.f32.mrb[0].mxu0
  %v1543 = vadd.f32 0.0, %v1542
  %v1544 = vpop.f32.mrb[0].mxu0
  %v1545 = vadd.f32 0.0, %v1544
  %v1546 = vpop.f32.mrb[0].mxu0
  %v1547 = vadd.f32 0.0, %v1546
  %1548 = vdwg.mxu0
  %v1549 = vadd.f32 %v1498, %v1541
  %v1550 = vadd.f32 %v1499, %v1543
  %v1551 = vadd.f32 %v1500, %v1545
  %v1552 = vadd.f32 %v1501, %v1547
  %v1553 = vmul.f32 %v1549, 0.5
  %v1554 = vmul.f32 %v1550, 0.5
  %v1555 = vmul.f32 %v1551, 0.5
  %v1556 = vmul.f32 %v1552, 0.5
  %v1557 = vtanh.pop %v1553
  %v1558 = vtanh.pop %v1554
  %v1559 = vtanh.pop %v1555
  %v1560 = vtanh.pop %v1556
  %v1561 = vmul.f32 %v1557, 0.5
  %v1562 = vmul.f32 %v1558, 0.5
  %v1563 = vmul.f32 %v1559, 0.5
  %v1564 = vmul.f32 %v1560, 0.5
  %v1565 = vadd.f32 %v1561, 0.5
  %v1566 = vadd.f32 %v1562, 0.5
  %v1567 = vadd.f32 %v1563, 0.5
  %v1568 = vadd.f32 %v1564, 0.5
  %v1569 = vtanh.pop %v1550
  %v1570 = vtanh.pop %v1552
  %v1571 = vmul.f32 %v1565, %v1484
  %v1572 = vmul.f32 %v1567, %v1485
  %1575 = vrot.lane.b32.xlu0 %v1569, 64
  %v1576 = vpop.permute.xlu0 %1575
  %1577 = vrot.lane.b32.xlu0 %v1570, 64
  %v1578 = vpop.permute.xlu0 %1577
  %v1581 = vmul.f32 %v1565, %v1576
  %v1582 = vmul.f32 %v1567, %v1578
  %1585 = vrot.lane.b32.xlu0 %v1581, 64
  %v1586 = vpop.permute.xlu0 %1585
  %1587 = vrot.lane.b32.xlu0 %v1582, 64
  %v1588 = vpop.permute.xlu0 %1587
  %v1591 = vadd.f32 %v1571, %v1586
  %v1592 = vadd.f32 %v1572, %v1588
  %v1593 = vtanh.pop %v1591
  %v1594 = vtanh.pop %v1592
  %1597 = vrot.lane.b32.xlu0 %v1593, 64
  %v1598 = vpop.permute.xlu0 %1597
  %1599 = vrot.lane.b32.xlu0 %v1594, 64
  %v1600 = vpop.permute.xlu0 %1599
  %v1603 = vmul.f32 %v1566, %v1598
  %v1604 = vmul.f32 %v1568, %v1600
  %v1605 = vld [vmem:[#allocation2 + $0x140] sm:$0xff]
  %v1606 = vld [vmem:[#allocation2 + $0x148] sm:$0xff]
  %v1607 = vld [vmem:[#allocation2 + $0x150] sm:$0xff]
  %v1608 = vld [vmem:[#allocation2 + $0x158] sm:$0xff]
  %v1609 = vpack.c.bf16 %v1604, %v1603
  %v1611 = vsel %vm539, %v1609, 0
  %1613 = vmatprep.subr.bf16.mxu0 %v524
  %1614 = vmatpush1.bf16.msra.mxu0 %v523
  %1615 = vmatprep.subr.bf16.mxu0 %v526
  %1616 = vmatpush1.bf16.msra.mxu0 %v525
  %1617 = vmatprep.subr.bf16.mxu0 %v528
  %1618 = vmatpush1.bf16.msra.mxu0 %v527
  %1619 = vmatprep.subr.bf16.mxu0 %v530
  %1620 = vmatpush1.bf16.msra.mxu0 %v529
  %1621 = vmatprep.subr.bf16.mxu0 0
  %1622 = vmatpush1.bf16.msra.mxu0 0
  %1623 = vmatprep.subr.bf16.mxu0 0
  %1624 = vmatpush1.bf16.msra.mxu0 0
  %1625 = vmatprep.subr.bf16.mxu0 0
  %1626 = vmatpush1.bf16.msra.mxu0 0
  %1627 = vmatprep.subr.bf16.mxu0 0
  %1628 = vmatpush1.bf16.msra.mxu0 0
  %1629 = vmatprep.subr.bf16.mxu0 0
  %1630 = vmatpush1.bf16.msra.mxu0 0
  %1631 = vmatprep.subr.bf16.mxu0 0
  %1632 = vmatpush1.bf16.msra.mxu0 0
  %1633 = vmatprep.subr.bf16.mxu0 0
  %1634 = vmatpush1.bf16.msra.mxu0 0
  %1635 = vmatprep.subr.bf16.mxu0 0
  %1636 = vmatpush1.bf16.msra.mxu0 0
  %1637 = vmatprep.subr.bf16.mxu0 0
  %1638 = vmatpush1.bf16.msra.mxu0 0
  %1639 = vmatprep.subr.bf16.mxu0 0
  %1640 = vmatpush1.bf16.msra.mxu0 0
  %1641 = vmatprep.subr.bf16.mxu0 0
  %1642 = vmatpush1.bf16.msra.mxu0 0
  %1643 = vmatprep.subr.bf16.mxu0 0
  %1644 = vmatpush1.bf16.msra.mxu0 0
  %1645 = vmatprep.mubr.bf16.mxu0 0
  %1646 = vmatmul.mubr.bf16.gmra.mrb[0].mxu0 %v1611
  %v1647 = vpop.f32.mrb[0].mxu0
  %v1648 = vadd.f32 0.0, %v1647
  %v1649 = vpop.f32.mrb[0].mxu0
  %v1650 = vadd.f32 0.0, %v1649
  %v1651 = vpop.f32.mrb[0].mxu0
  %v1652 = vadd.f32 0.0, %v1651
  %v1653 = vpop.f32.mrb[0].mxu0
  %v1654 = vadd.f32 0.0, %v1653
  %1655 = vdwg.mxu0
  %v1656 = vadd.f32 %v1605, %v1648
  %v1657 = vadd.f32 %v1606, %v1650
  %v1658 = vadd.f32 %v1607, %v1652
  %v1659 = vadd.f32 %v1608, %v1654
  %v1660 = vmul.f32 %v1656, 0.5
  %v1661 = vmul.f32 %v1657, 0.5
  %v1662 = vmul.f32 %v1658, 0.5
  %v1663 = vmul.f32 %v1659, 0.5
  %v1664 = vtanh.pop %v1660
  %v1665 = vtanh.pop %v1661
  %v1666 = vtanh.pop %v1662
  %v1667 = vtanh.pop %v1663
  %v1668 = vmul.f32 %v1664, 0.5
  %v1669 = vmul.f32 %v1665, 0.5
  %v1670 = vmul.f32 %v1666, 0.5
  %v1671 = vmul.f32 %v1667, 0.5
  %v1672 = vadd.f32 %v1668, 0.5
  %v1673 = vadd.f32 %v1669, 0.5
  %v1674 = vadd.f32 %v1670, 0.5
  %v1675 = vadd.f32 %v1671, 0.5
  %v1676 = vtanh.pop %v1657
  %v1677 = vtanh.pop %v1659
  %v1678 = vmul.f32 %v1672, %v1591
  %v1679 = vmul.f32 %v1674, %v1592
  %1682 = vrot.lane.b32.xlu0 %v1676, 64
  %v1683 = vpop.permute.xlu0 %1682
  %1684 = vrot.lane.b32.xlu0 %v1677, 64
  %v1685 = vpop.permute.xlu0 %1684
  %v1688 = vmul.f32 %v1672, %v1683
  %v1689 = vmul.f32 %v1674, %v1685
  %1692 = vrot.lane.b32.xlu0 %v1688, 64
  %v1693 = vpop.permute.xlu0 %1692
  %1694 = vrot.lane.b32.xlu0 %v1689, 64
  %v1695 = vpop.permute.xlu0 %1694
  %v1698 = vadd.f32 %v1678, %v1693
  %v1699 = vadd.f32 %v1679, %v1695
  %v1700 = vtanh.pop %v1698
  %v1701 = vtanh.pop %v1699
  %1704 = vrot.lane.b32.xlu0 %v1700, 64
  %v1705 = vpop.permute.xlu0 %1704
  %1706 = vrot.lane.b32.xlu0 %v1701, 64
  %v1707 = vpop.permute.xlu0 %1706
  %v1710 = vmul.f32 %v1673, %v1705
  %v1711 = vmul.f32 %v1675, %v1707
  %v1712 = vld [vmem:[#allocation2 + $0x160] sm:$0xff]
  %v1713 = vld [vmem:[#allocation2 + $0x168] sm:$0xff]
  %v1714 = vld [vmem:[#allocation2 + $0x170] sm:$0xff]
  %v1715 = vld [vmem:[#allocation2 + $0x178] sm:$0xff]
  %v1716 = vpack.c.bf16 %v1711, %v1710
  %v1718 = vsel %vm539, %v1716, 0
  %1720 = vmatprep.subr.bf16.mxu0 %v524
  %1721 = vmatpush1.bf16.msra.mxu0 %v523
  %1722 = vmatprep.subr.bf16.mxu0 %v526
  %1723 = vmatpush1.bf16.msra.mxu0 %v525
  %1724 = vmatprep.subr.bf16.mxu0 %v528
  %1725 = vmatpush1.bf16.msra.mxu0 %v527
  %1726 = vmatprep.subr.bf16.mxu0 %v530
  %1727 = vmatpush1.bf16.msra.mxu0 %v529
  %1728 = vmatprep.subr.bf16.mxu0 0
  %1729 = vmatpush1.bf16.msra.mxu0 0
  %1730 = vmatprep.subr.bf16.mxu0 0
  %1731 = vmatpush1.bf16.msra.mxu0 0
  %1732 = vmatprep.subr.bf16.mxu0 0
  %1733 = vmatpush1.bf16.msra.mxu0 0
  %1734 = vmatprep.subr.bf16.mxu0 0
  %1735 = vmatpush1.bf16.msra.mxu0 0
  %1736 = vmatprep.subr.bf16.mxu0 0
  %1737 = vmatpush1.bf16.msra.mxu0 0
  %1738 = vmatprep.subr.bf16.mxu0 0
  %1739 = vmatpush1.bf16.msra.mxu0 0
  %1740 = vmatprep.subr.bf16.mxu0 0
  %1741 = vmatpush1.bf16.msra.mxu0 0
  %1742 = vmatprep.subr.bf16.mxu0 0
  %1743 = vmatpush1.bf16.msra.mxu0 0
  %1744 = vmatprep.subr.bf16.mxu0 0
  %1745 = vmatpush1.bf16.msra.mxu0 0
  %1746 = vmatprep.subr.bf16.mxu0 0
  %1747 = vmatpush1.bf16.msra.mxu0 0
  %1748 = vmatprep.subr.bf16.mxu0 0
  %1749 = vmatpush1.bf16.msra.mxu0 0
  %1750 = vmatprep.subr.bf16.mxu0 0
  %1751 = vmatpush1.bf16.msra.mxu0 0
  %1752 = vmatprep.mubr.bf16.mxu0 0
  %1753 = vmatmul.mubr.bf16.gmra.mrb[0].mxu0 %v1718
  %v1754 = vpop.f32.mrb[0].mxu0
  %v1755 = vadd.f32 0.0, %v1754
  %v1756 = vpop.f32.mrb[0].mxu0
  %v1757 = vadd.f32 0.0, %v1756
  %v1758 = vpop.f32.mrb[0].mxu0
  %v1759 = vadd.f32 0.0, %v1758
  %v1760 = vpop.f32.mrb[0].mxu0
  %v1761 = vadd.f32 0.0, %v1760
  %1762 = vdwg.mxu0
  %v1763 = vadd.f32 %v1712, %v1755
  %v1764 = vadd.f32 %v1713, %v1757
  %v1765 = vadd.f32 %v1714, %v1759
  %v1766 = vadd.f32 %v1715, %v1761
  %v1767 = vmul.f32 %v1763, 0.5
  %v1768 = vmul.f32 %v1764, 0.5
  %v1769 = vmul.f32 %v1765, 0.5
  %v1770 = vmul.f32 %v1766, 0.5
  %v1771 = vtanh.pop %v1767
  %v1772 = vtanh.pop %v1768
  %v1773 = vtanh.pop %v1769
  %v1774 = vtanh.pop %v1770
  %v1775 = vmul.f32 %v1771, 0.5
  %v1776 = vmul.f32 %v1772, 0.5
  %v1777 = vmul.f32 %v1773, 0.5
  %v1778 = vmul.f32 %v1774, 0.5
  %v1779 = vadd.f32 %v1775, 0.5
  %v1780 = vadd.f32 %v1776, 0.5
  %v1781 = vadd.f32 %v1777, 0.5
  %v1782 = vadd.f32 %v1778, 0.5
  %v1783 = vtanh.pop %v1764
  %v1784 = vtanh.pop %v1766
  %v1785 = vmul.f32 %v1779, %v1698
  %v1786 = vmul.f32 %v1781, %v1699
  %1789 = vrot.lane.b32.xlu0 %v1783, 64
  %v1790 = vpop.permute.xlu0 %1789
  %1791 = vrot.lane.b32.xlu0 %v1784, 64
  %v1792 = vpop.permute.xlu0 %1791
  %v1795 = vmul.f32 %v1779, %v1790
  %v1796 = vmul.f32 %v1781, %v1792
  %1799 = vrot.lane.b32.xlu0 %v1795, 64
  %v1800 = vpop.permute.xlu0 %1799
  %1801 = vrot.lane.b32.xlu0 %v1796, 64
  %v1802 = vpop.permute.xlu0 %1801
  %v1805 = vadd.f32 %v1785, %v1800
  %v1806 = vadd.f32 %v1786, %v1802
  %v1807 = vtanh.pop %v1805
  %v1808 = vtanh.pop %v1806
  %1811 = vrot.lane.b32.xlu0 %v1807, 64
  %v1812 = vpop.permute.xlu0 %1811
  %1813 = vrot.lane.b32.xlu0 %v1808, 64
  %v1814 = vpop.permute.xlu0 %1813
  %v1817 = vmul.f32 %v1780, %v1812
  %v1818 = vmul.f32 %v1782, %v1814
  %v1819 = vld [vmem:[#allocation2 + $0x180] sm:$0xff]
  %v1820 = vld [vmem:[#allocation2 + $0x188] sm:$0xff]
  %v1821 = vld [vmem:[#allocation2 + $0x190] sm:$0xff]
  %v1822 = vld [vmem:[#allocation2 + $0x198] sm:$0xff]
  %v1823 = vpack.c.bf16 %v1818, %v1817
  %v1825 = vsel %vm539, %v1823, 0
  %1827 = vmatprep.subr.bf16.mxu0 %v524
  %1828 = vmatpush1.bf16.msra.mxu0 %v523
  %1829 = vmatprep.subr.bf16.mxu0 %v526
  %1830 = vmatpush1.bf16.msra.mxu0 %v525
  %1831 = vmatprep.subr.bf16.mxu0 %v528
  %1832 = vmatpush1.bf16.msra.mxu0 %v527
  %1833 = vmatprep.subr.bf16.mxu0 %v530
  %1834 = vmatpush1.bf16.msra.mxu0 %v529
  %1835 = vmatprep.subr.bf16.mxu0 0
  %1836 = vmatpush1.bf16.msra.mxu0 0
  %1837 = vmatprep.subr.bf16.mxu0 0
  %1838 = vmatpush1.bf16.msra.mxu0 0
  %1839 = vmatprep.subr.bf16.mxu0 0
  %1840 = vmatpush1.bf16.msra.mxu0 0
  %1841 = vmatprep.subr.bf16.mxu0 0
  %1842 = vmatpush1.bf16.msra.mxu0 0
  %1843 = vmatprep.subr.bf16.mxu0 0
  %1844 = vmatpush1.bf16.msra.mxu0 0
  %1845 = vmatprep.subr.bf16.mxu0 0
  %1846 = vmatpush1.bf16.msra.mxu0 0
  %1847 = vmatprep.subr.bf16.mxu0 0
  %1848 = vmatpush1.bf16.msra.mxu0 0
  %1849 = vmatprep.subr.bf16.mxu0 0
  %1850 = vmatpush1.bf16.msra.mxu0 0
  %1851 = vmatprep.subr.bf16.mxu0 0
  %1852 = vmatpush1.bf16.msra.mxu0 0
  %1853 = vmatprep.subr.bf16.mxu0 0
  %1854 = vmatpush1.bf16.msra.mxu0 0
  %1855 = vmatprep.subr.bf16.mxu0 0
  %1856 = vmatpush1.bf16.msra.mxu0 0
  %1857 = vmatprep.subr.bf16.mxu0 0
  %1858 = vmatpush1.bf16.msra.mxu0 0
  %1859 = vmatprep.mubr.bf16.mxu0 0
  %1860 = vmatmul.mubr.bf16.gmra.mrb[0].mxu0 %v1825
  %v1861 = vpop.f32.mrb[0].mxu0
  %v1862 = vadd.f32 0.0, %v1861
  %v1863 = vpop.f32.mrb[0].mxu0
  %v1864 = vadd.f32 0.0, %v1863
  %v1865 = vpop.f32.mrb[0].mxu0
  %v1866 = vadd.f32 0.0, %v1865
  %v1867 = vpop.f32.mrb[0].mxu0
  %v1868 = vadd.f32 0.0, %v1867
  %1869 = vdwg.mxu0
  %v1870 = vadd.f32 %v1819, %v1862
  %v1871 = vadd.f32 %v1820, %v1864
  %v1872 = vadd.f32 %v1821, %v1866
  %v1873 = vadd.f32 %v1822, %v1868
  %v1874 = vmul.f32 %v1870, 0.5
  %v1875 = vmul.f32 %v1871, 0.5
  %v1876 = vmul.f32 %v1872, 0.5
  %v1877 = vmul.f32 %v1873, 0.5
  %v1878 = vtanh.pop %v1874
  %v1879 = vtanh.pop %v1875
  %v1880 = vtanh.pop %v1876
  %v1881 = vtanh.pop %v1877
  %v1882 = vmul.f32 %v1878, 0.5
  %v1883 = vmul.f32 %v1879, 0.5
  %v1884 = vmul.f32 %v1880, 0.5
  %v1885 = vmul.f32 %v1881, 0.5
  %v1886 = vadd.f32 %v1882, 0.5
  %v1887 = vadd.f32 %v1883, 0.5
  %v1888 = vadd.f32 %v1884, 0.5
  %v1889 = vadd.f32 %v1885, 0.5
  %v1890 = vtanh.pop %v1871
  %v1891 = vtanh.pop %v1873
  %v1892 = vmul.f32 %v1886, %v1805
  %v1893 = vmul.f32 %v1888, %v1806
  %1896 = vrot.lane.b32.xlu0 %v1890, 64
  %v1897 = vpop.permute.xlu0 %1896
  %1898 = vrot.lane.b32.xlu0 %v1891, 64
  %v1899 = vpop.permute.xlu0 %1898
  %v1902 = vmul.f32 %v1886, %v1897
  %v1903 = vmul.f32 %v1888, %v1899
  %1906 = vrot.lane.b32.xlu0 %v1902, 64
  %v1907 = vpop.permute.xlu0 %1906
  %1908 = vrot.lane.b32.xlu0 %v1903, 64
  %v1909 = vpop.permute.xlu0 %1908
  %v1912 = vadd.f32 %v1892, %v1907
  %v1913 = vadd.f32 %v1893, %v1909
  %v1914 = vtanh.pop %v1912
  %v1915 = vtanh.pop %v1913
  %1918 = vrot.lane.b32.xlu0 %v1914, 64
  %v1919 = vpop.permute.xlu0 %1918
  %1920 = vrot.lane.b32.xlu0 %v1915, 64
  %v1921 = vpop.permute.xlu0 %1920
  %v1924 = vmul.f32 %v1887, %v1919
  %v1925 = vmul.f32 %v1889, %v1921
  %v1926 = vld [vmem:[#allocation2 + $0x1a0] sm:$0xff]
  %v1927 = vld [vmem:[#allocation2 + $0x1a8] sm:$0xff]
  %v1928 = vld [vmem:[#allocation2 + $0x1b0] sm:$0xff]
  %v1929 = vld [vmem:[#allocation2 + $0x1b8] sm:$0xff]
  %v1930 = vpack.c.bf16 %v1925, %v1924
  %v1932 = vsel %vm539, %v1930, 0
  %1934 = vmatprep.subr.bf16.mxu0 %v524
  %1935 = vmatpush1.bf16.msra.mxu0 %v523
  %1936 = vmatprep.subr.bf16.mxu0 %v526
  %1937 = vmatpush1.bf16.msra.mxu0 %v525
  %1938 = vmatprep.subr.bf16.mxu0 %v528
  %1939 = vmatpush1.bf16.msra.mxu0 %v527
  %1940 = vmatprep.subr.bf16.mxu0 %v530
  %1941 = vmatpush1.bf16.msra.mxu0 %v529
  %1942 = vmatprep.subr.bf16.mxu0 0
  %1943 = vmatpush1.bf16.msra.mxu0 0
  %1944 = vmatprep.subr.bf16.mxu0 0
  %1945 = vmatpush1.bf16.msra.mxu0 0
  %1946 = vmatprep.subr.bf16.mxu0 0
  %1947 = vmatpush1.bf16.msra.mxu0 0
  %1948 = vmatprep.subr.bf16.mxu0 0
  %1949 = vmatpush1.bf16.msra.mxu0 0
  %1950 = vmatprep.subr.bf16.mxu0 0
  %1951 = vmatpush1.bf16.msra.mxu0 0
  %1952 = vmatprep.subr.bf16.mxu0 0
  %1953 = vmatpush1.bf16.msra.mxu0 0
  %1954 = vmatprep.subr.bf16.mxu0 0
  %1955 = vmatpush1.bf16.msra.mxu0 0
  %1956 = vmatprep.subr.bf16.mxu0 0
  %1957 = vmatpush1.bf16.msra.mxu0 0
  %1958 = vmatprep.subr.bf16.mxu0 0
  %1959 = vmatpush1.bf16.msra.mxu0 0
  %1960 = vmatprep.subr.bf16.mxu0 0
  %1961 = vmatpush1.bf16.msra.mxu0 0
  %1962 = vmatprep.subr.bf16.mxu0 0
  %1963 = vmatpush1.bf16.msra.mxu0 0
  %1964 = vmatprep.subr.bf16.mxu0 0
  %1965 = vmatpush1.bf16.msra.mxu0 0
  %1966 = vmatprep.mubr.bf16.mxu0 0
  %1967 = vmatmul.mubr.bf16.gmra.mrb[0].mxu0 %v1932
  %v1968 = vpop.f32.mrb[0].mxu0
  %v1969 = vadd.f32 0.0, %v1968
  %v1970 = vpop.f32.mrb[0].mxu0
  %v1971 = vadd.f32 0.0, %v1970
  %v1972 = vpop.f32.mrb[0].mxu0
  %v1973 = vadd.f32 0.0, %v1972
  %v1974 = vpop.f32.mrb[0].mxu0
  %v1975 = vadd.f32 0.0, %v1974
  %1976 = vdwg.mxu0
  %v1977 = vadd.f32 %v1926, %v1969
  %v1978 = vadd.f32 %v1927, %v1971
  %v1979 = vadd.f32 %v1928, %v1973
  %v1980 = vadd.f32 %v1929, %v1975
  %v1981 = vmul.f32 %v1977, 0.5
  %v1982 = vmul.f32 %v1978, 0.5
  %v1983 = vmul.f32 %v1979, 0.5
  %v1984 = vmul.f32 %v1980, 0.5
  %v1985 = vtanh.pop %v1981
  %v1986 = vtanh.pop %v1982
  %v1987 = vtanh.pop %v1983
  %v1988 = vtanh.pop %v1984
  %v1989 = vmul.f32 %v1985, 0.5
  %v1990 = vmul.f32 %v1986, 0.5
  %v1991 = vmul.f32 %v1987, 0.5
  %v1992 = vmul.f32 %v1988, 0.5
  %v1993 = vadd.f32 %v1989, 0.5
  %v1994 = vadd.f32 %v1990, 0.5
  %v1995 = vadd.f32 %v1991, 0.5
  %v1996 = vadd.f32 %v1992, 0.5
  %v1997 = vtanh.pop %v1978
  %v1998 = vtanh.pop %v1980
  %v1999 = vmul.f32 %v1993, %v1912
  %v2000 = vmul.f32 %v1995, %v1913
  %2003 = vrot.lane.b32.xlu0 %v1997, 64
  %v2004 = vpop.permute.xlu0 %2003
  %2005 = vrot.lane.b32.xlu0 %v1998, 64
  %v2006 = vpop.permute.xlu0 %2005
  %v2009 = vmul.f32 %v1993, %v2004
  %v2010 = vmul.f32 %v1995, %v2006
  %2013 = vrot.lane.b32.xlu0 %v2009, 64
  %v2014 = vpop.permute.xlu0 %2013
  %2015 = vrot.lane.b32.xlu0 %v2010, 64
  %v2016 = vpop.permute.xlu0 %2015
  %v2019 = vadd.f32 %v1999, %v2014
  %v2020 = vadd.f32 %v2000, %v2016
  %v2021 = vtanh.pop %v2019
  %v2022 = vtanh.pop %v2020
  %2025 = vrot.lane.b32.xlu0 %v2021, 64
  %v2026 = vpop.permute.xlu0 %2025
  %2027 = vrot.lane.b32.xlu0 %v2022, 64
  %v2028 = vpop.permute.xlu0 %2027
  %v2031 = vmul.f32 %v1994, %v2026
  %v2032 = vmul.f32 %v1996, %v2028
  %v2033 = vld [vmem:[#allocation2 + $0x1c0] sm:$0xff]
  %v2034 = vld [vmem:[#allocation2 + $0x1c8] sm:$0xff]
  %v2035 = vld [vmem:[#allocation2 + $0x1d0] sm:$0xff]
  %v2036 = vld [vmem:[#allocation2 + $0x1d8] sm:$0xff]
  %v2037 = vpack.c.bf16 %v2032, %v2031
  %v2039 = vsel %vm539, %v2037, 0
  %2041 = vmatprep.subr.bf16.mxu0 %v524
  %2042 = vmatpush1.bf16.msra.mxu0 %v523
  %2043 = vmatprep.subr.bf16.mxu0 %v526
  %2044 = vmatpush1.bf16.msra.mxu0 %v525
  %2045 = vmatprep.subr.bf16.mxu0 %v528
  %2046 = vmatpush1.bf16.msra.mxu0 %v527
  %2047 = vmatprep.subr.bf16.mxu0 %v530
  %2048 = vmatpush1.bf16.msra.mxu0 %v529
  %2049 = vmatprep.subr.bf16.mxu0 0
  %2050 = vmatpush1.bf16.msra.mxu0 0
  %2051 = vmatprep.subr.bf16.mxu0 0
  %2052 = vmatpush1.bf16.msra.mxu0 0
  %2053 = vmatprep.subr.bf16.mxu0 0
  %2054 = vmatpush1.bf16.msra.mxu0 0
  %2055 = vmatprep.subr.bf16.mxu0 0
  %2056 = vmatpush1.bf16.msra.mxu0 0
  %2057 = vmatprep.subr.bf16.mxu0 0
  %2058 = vmatpush1.bf16.msra.mxu0 0
  %2059 = vmatprep.subr.bf16.mxu0 0
  %2060 = vmatpush1.bf16.msra.mxu0 0
  %2061 = vmatprep.subr.bf16.mxu0 0
  %2062 = vmatpush1.bf16.msra.mxu0 0
  %2063 = vmatprep.subr.bf16.mxu0 0
  %2064 = vmatpush1.bf16.msra.mxu0 0
  %2065 = vmatprep.subr.bf16.mxu0 0
  %2066 = vmatpush1.bf16.msra.mxu0 0
  %2067 = vmatprep.subr.bf16.mxu0 0
  %2068 = vmatpush1.bf16.msra.mxu0 0
  %2069 = vmatprep.subr.bf16.mxu0 0
  %2070 = vmatpush1.bf16.msra.mxu0 0
  %2071 = vmatprep.subr.bf16.mxu0 0
  %2072 = vmatpush1.bf16.msra.mxu0 0
  %2073 = vmatprep.mubr.bf16.mxu0 0
  %2074 = vmatmul.mubr.bf16.gmra.mrb[0].mxu0 %v2039
  %v2075 = vpop.f32.mrb[0].mxu0
  %v2076 = vadd.f32 0.0, %v2075
  %v2077 = vpop.f32.mrb[0].mxu0
  %v2078 = vadd.f32 0.0, %v2077
  %v2079 = vpop.f32.mrb[0].mxu0
  %v2080 = vadd.f32 0.0, %v2079
  %v2081 = vpop.f32.mrb[0].mxu0
  %v2082 = vadd.f32 0.0, %v2081
  %2083 = vdwg.mxu0
  %v2084 = vadd.f32 %v2033, %v2076
  %v2085 = vadd.f32 %v2034, %v2078
  %v2086 = vadd.f32 %v2035, %v2080
  %v2087 = vadd.f32 %v2036, %v2082
  %v2088 = vmul.f32 %v2084, 0.5
  %v2089 = vmul.f32 %v2085, 0.5
  %v2090 = vmul.f32 %v2086, 0.5
  %v2091 = vmul.f32 %v2087, 0.5
  %v2092 = vtanh.pop %v2088
  %v2093 = vtanh.pop %v2089
  %v2094 = vtanh.pop %v2090
  %v2095 = vtanh.pop %v2091
  %v2096 = vmul.f32 %v2092, 0.5
  %v2097 = vmul.f32 %v2093, 0.5
  %v2098 = vmul.f32 %v2094, 0.5
  %v2099 = vmul.f32 %v2095, 0.5
  %v2100 = vadd.f32 %v2096, 0.5
  %v2101 = vadd.f32 %v2097, 0.5
  %v2102 = vadd.f32 %v2098, 0.5
  %v2103 = vadd.f32 %v2099, 0.5
  %v2104 = vtanh.pop %v2085
  %v2105 = vtanh.pop %v2087
  %v2106 = vmul.f32 %v2100, %v2019
  %v2107 = vmul.f32 %v2102, %v2020
  %2110 = vrot.lane.b32.xlu0 %v2104, 64
  %v2111 = vpop.permute.xlu0 %2110
  %2112 = vrot.lane.b32.xlu0 %v2105, 64
  %v2113 = vpop.permute.xlu0 %2112
  %v2116 = vmul.f32 %v2100, %v2111
  %v2117 = vmul.f32 %v2102, %v2113
  %2120 = vrot.lane.b32.xlu0 %v2116, 64
  %v2121 = vpop.permute.xlu0 %2120
  %2122 = vrot.lane.b32.xlu0 %v2117, 64
  %v2123 = vpop.permute.xlu0 %2122
  %v2126 = vadd.f32 %v2106, %v2121
  %v2127 = vadd.f32 %v2107, %v2123
  %v2128 = vtanh.pop %v2126
  %v2129 = vtanh.pop %v2127
  %2132 = vrot.lane.b32.xlu0 %v2128, 64
  %v2133 = vpop.permute.xlu0 %2132
  %2134 = vrot.lane.b32.xlu0 %v2129, 64
  %v2135 = vpop.permute.xlu0 %2134
  %v2138 = vmul.f32 %v2101, %v2133
  %v2139 = vmul.f32 %v2103, %v2135
  %v2140 = vld [vmem:[#allocation2 + $0x1e0] sm:$0xff]
  %v2141 = vld [vmem:[#allocation2 + $0x1e8] sm:$0xff]
  %v2142 = vld [vmem:[#allocation2 + $0x1f0] sm:$0xff]
  %v2143 = vld [vmem:[#allocation2 + $0x1f8] sm:$0xff]
  %v2144 = vpack.c.bf16 %v2139, %v2138
  %v2146 = vsel %vm539, %v2144, 0
  %2148 = vmatprep.subr.bf16.mxu0 %v524
  %2149 = vmatpush1.bf16.msra.mxu0 %v523
  %2150 = vmatprep.subr.bf16.mxu0 %v526
  %2151 = vmatpush1.bf16.msra.mxu0 %v525
  %2152 = vmatprep.subr.bf16.mxu0 %v528
  %2153 = vmatpush1.bf16.msra.mxu0 %v527
  %2154 = vmatprep.subr.bf16.mxu0 %v530
  %2155 = vmatpush1.bf16.msra.mxu0 %v529
  %2156 = vmatprep.subr.bf16.mxu0 0
  %2157 = vmatpush1.bf16.msra.mxu0 0
  %2158 = vmatprep.subr.bf16.mxu0 0
  %2159 = vmatpush1.bf16.msra.mxu0 0
  %2160 = vmatprep.subr.bf16.mxu0 0
  %2161 = vmatpush1.bf16.msra.mxu0 0
  %2162 = vmatprep.subr.bf16.mxu0 0
  %2163 = vmatpush1.bf16.msra.mxu0 0
  %2164 = vmatprep.subr.bf16.mxu0 0
  %2165 = vmatpush1.bf16.msra.mxu0 0
  %2166 = vmatprep.subr.bf16.mxu0 0
  %2167 = vmatpush1.bf16.msra.mxu0 0
  %2168 = vmatprep.subr.bf16.mxu0 0
  %2169 = vmatpush1.bf16.msra.mxu0 0
  %2170 = vmatprep.subr.bf16.mxu0 0
  %2171 = vmatpush1.bf16.msra.mxu0 0
  %2172 = vmatprep.subr.bf16.mxu0 0
  %2173 = vmatpush1.bf16.msra.mxu0 0
  %2174 = vmatprep.subr.bf16.mxu0 0
  %2175 = vmatpush1.bf16.msra.mxu0 0
  %2176 = vmatprep.subr.bf16.mxu0 0
  %2177 = vmatpush1.bf16.msra.mxu0 0
  %2178 = vmatprep.subr.bf16.mxu0 0
  %2179 = vmatpush1.bf16.msra.mxu0 0
  %2180 = vmatprep.mubr.bf16.mxu0 0
  %2181 = vmatmul.mubr.bf16.gmra.mrb[0].mxu0 %v2146
  %v2182 = vpop.f32.mrb[0].mxu0
  %v2183 = vadd.f32 0.0, %v2182
  %v2184 = vpop.f32.mrb[0].mxu0
  %v2185 = vadd.f32 0.0, %v2184
  %v2186 = vpop.f32.mrb[0].mxu0
  %v2187 = vadd.f32 0.0, %v2186
  %v2188 = vpop.f32.mrb[0].mxu0
  %v2189 = vadd.f32 0.0, %v2188
  %2190 = vdwg.mxu0
  %v2191 = vadd.f32 %v2140, %v2183
  %v2192 = vadd.f32 %v2141, %v2185
  %v2193 = vadd.f32 %v2142, %v2187
  %v2194 = vadd.f32 %v2143, %v2189
  %v2195 = vmul.f32 %v2191, 0.5
  %v2196 = vmul.f32 %v2192, 0.5
  %v2197 = vmul.f32 %v2193, 0.5
  %v2198 = vmul.f32 %v2194, 0.5
  %v2199 = vtanh.pop %v2195
  %v2200 = vtanh.pop %v2196
  %v2201 = vtanh.pop %v2197
  %v2202 = vtanh.pop %v2198
  %v2203 = vmul.f32 %v2199, 0.5
  %v2204 = vmul.f32 %v2200, 0.5
  %v2205 = vmul.f32 %v2201, 0.5
  %v2206 = vmul.f32 %v2202, 0.5
  %v2207 = vadd.f32 %v2203, 0.5
  %v2208 = vadd.f32 %v2204, 0.5
  %v2209 = vadd.f32 %v2205, 0.5
  %v2210 = vadd.f32 %v2206, 0.5
  %v2211 = vtanh.pop %v2192
  %v2212 = vtanh.pop %v2194
  %v2213 = vmul.f32 %v2207, %v2126
  %v2214 = vmul.f32 %v2209, %v2127
  %2217 = vrot.lane.b32.xlu0 %v2211, 64
  %v2218 = vpop.permute.xlu0 %2217
  %2219 = vrot.lane.b32.xlu0 %v2212, 64
  %v2220 = vpop.permute.xlu0 %2219
  %v2223 = vmul.f32 %v2207, %v2218
  %v2224 = vmul.f32 %v2209, %v2220
  %2227 = vrot.lane.b32.xlu0 %v2223, 64
  %v2228 = vpop.permute.xlu0 %2227
  %2229 = vrot.lane.b32.xlu0 %v2224, 64
  %v2230 = vpop.permute.xlu0 %2229
  %v2233 = vadd.f32 %v2213, %v2228
  %v2234 = vadd.f32 %v2214, %v2230
  %v2235 = vtanh.pop %v2233
  %v2236 = vtanh.pop %v2234
  %2239 = vrot.lane.b32.xlu0 %v2235, 64
  %v2240 = vpop.permute.xlu0 %2239
  %2241 = vrot.lane.b32.xlu0 %v2236, 64
  %v2242 = vpop.permute.xlu0 %2241
  %v2245 = vmul.f32 %v2208, %v2240
  %v2246 = vmul.f32 %v2210, %v2242
  %v2247 = vmax.f32 %v2245, 0.0
  %v2248 = vmax.f32 %v2246, 0.0
  %v2249 = vld [vmem:[%s4] sm:$0xff]
  %v2250 = vld [vmem:[%s4 + $0x8] sm:$0xff]
  %v2251 = vld [vmem:[%s4 + $0x10] sm:$0xff]
  %v2252 = vld [vmem:[%s4 + $0x18] sm:$0xff]
  %v2253 = vld [vmem:[%s4 + $0x20] sm:$0xff]
  %v2254 = vld [vmem:[%s4 + $0x28] sm:$0xff]
  %v2255 = vld [vmem:[%s4 + $0x30] sm:$0xff]
  %v2256 = vld [vmem:[%s4 + $0x38] sm:$0xff]
  %v2257 = vld [vmem:[%s5] sm:$0x1]
  %v2259 = vlaneseq
  %v2260 = vshrl.u32 %v2259, 7
  %v2261 = vsub.s32 0, %v2260
  %v2262 = vrot.slane %v2257, %v2261
  %v2265 = vsel %vm539, %v2247, 0
  %v2268 = vsel %vm539, %v2248, 0
  %2270 = vmatprep.subr.mxu0 0.0
  %2271 = vmatpush1.msra.mxu0 %v2249
  %2272 = vmatprep.subr.mxu0 0.0
  %2273 = vmatpush1.msra.mxu0 %v2250
  %2274 = vmatprep.subr.mxu0 0.0
  %2275 = vmatpush1.msra.mxu0 %v2251
  %2276 = vmatprep.subr.mxu0 0.0
  %2277 = vmatpush1.msra.mxu0 %v2252
  %2278 = vmatprep.subr.mxu0 0.0
  %2279 = vmatpush1.msra.mxu0 %v2253
  %2280 = vmatprep.subr.mxu0 0.0
  %2281 = vmatpush1.msra.mxu0 %v2254
  %2282 = vmatprep.subr.mxu0 0.0
  %2283 = vmatpush1.msra.mxu0 %v2255
  %2284 = vmatprep.subr.mxu0 0.0
  %2285 = vmatpush1.msra.mxu0 %v2256
  %2286 = vmatprep.subr.mxu0 0.0
  %2287 = vmatpush1.msra.mxu0 0.0
  %2288 = vmatprep.subr.mxu0 0.0
  %2289 = vmatpush1.msra.mxu0 0.0
  %2290 = vmatprep.subr.mxu0 0.0
  %2291 = vmatpush1.msra.mxu0 0.0
  %2292 = vmatprep.subr.mxu0 0.0
  %2293 = vmatpush1.msra.mxu0 0.0
  %2294 = vmatprep.subr.mxu0 0.0
  %2295 = vmatpush1.msra.mxu0 0.0
  %2296 = vmatprep.subr.mxu0 0.0
  %2297 = vmatpush1.msra.mxu0 0.0
  %2298 = vmatprep.subr.mxu0 0.0
  %2299 = vmatpush1.msra.mxu0 0.0
  %2300 = vmatprep.subr.mxu0 0.0
  %2301 = vmatpush1.msra.mxu0 0.0
  %2302 = vmatprep.subr.mxu0 0.0
  %2303 = vmatpush1.msra.mxu0 0.0
  %2304 = vmatprep.subr.mxu0 0.0
  %2305 = vmatpush1.msra.mxu0 0.0
  %2306 = vmatprep.subr.mxu0 0.0
  %2307 = vmatpush1.msra.mxu0 0.0
  %2308 = vmatprep.subr.mxu0 0.0
  %2309 = vmatpush1.msra.mxu0 0.0
  %2310 = vmatprep.subr.mxu0 0.0
  %2311 = vmatpush1.msra.mxu0 0.0
  %2312 = vmatprep.subr.mxu0 0.0
  %2313 = vmatpush1.msra.mxu0 0.0
  %2314 = vmatprep.subr.mxu0 0.0
  %2315 = vmatpush1.msra.mxu0 0.0
  %2316 = vmatprep.subr.mxu0 0.0
  %2317 = vmatpush1.msra.mxu0 0.0
  %2318 = vmatprep.subr.mxu0 0.0
  %2319 = vmatpush1.msra.mxu0 0.0
  %2320 = vmatprep.subr.mxu0 0.0
  %2321 = vmatpush1.msra.mxu0 0.0
  %2322 = vmatprep.subr.mxu0 0.0
  %2323 = vmatpush1.msra.mxu0 0.0
  %2324 = vmatprep.subr.mxu0 0.0
  %2325 = vmatpush1.msra.mxu0 0.0
  %2326 = vmatprep.subr.mxu0 0.0
  %2327 = vmatpush1.msra.mxu0 0.0
  %2328 = vmatprep.subr.mxu0 0.0
  %2329 = vmatpush1.msra.mxu0 0.0
  %2330 = vmatprep.subr.mxu0 0.0
  %2331 = vmatpush1.msra.mxu0 0.0
  %2332 = vmatprep.subr.mxu0 0.0
  %2333 = vmatpush1.msra.mxu0 0.0
  %2334 = vmatprep.mubr.f32.mxu0 0.0
  %2335 = vmatmul.mubr.f32.gmra.mrb[0].mxu0 %v2265
  %v2336 = vpop.f32.mrb[0].mxu0
  %v2337 = vadd.f32 %v2262, %v2336
  %v2338 = vpop.f32.mrb[0].mxu0
  %2339 = vmatprep.mubr.f32.mxu0 0.0
  %2340 = vmatmul.mubr.f32.gmra.mrb[0].mxu0 %v2268
  %v2341 = vpop.f32.mrb[0].mxu0
  %v2342 = vadd.f32 %v2262, %v2341
  %v2343 = vpop.f32.mrb[0].mxu0
  %2344 = vdwg.mxu0
  %v2345 = vmax.f32 %v2337, 0.0
  %v2346 = vmax.f32 %v2342, 0.0
  %v2347 = vld [vmem:[%s6] sm:$0xff]
  %v2348 = vld [vmem:[%s6 + $0x8] sm:$0xff]
  %v2349 = vld [vmem:[%s6 + $0x10] sm:$0xff]
  %v2350 = vld [vmem:[%s6 + $0x18] sm:$0xff]
  %v2351 = vld [vmem:[%s6 + $0x20] sm:$0xff]
  %v2352 = vld [vmem:[%s6 + $0x28] sm:$0xff]
  %v2353 = vld [vmem:[%s6 + $0x30] sm:$0xff]
  %v2354 = vld [vmem:[%s6 + $0x38] sm:$0xff]
  %v2355 = vld [vmem:[%s6 + $0x40] sm:$0xff]
  %v2356 = vld [vmem:[%s6 + $0x48] sm:$0xff]
  %v2357 = vld [vmem:[%s6 + $0x50] sm:$0xff]
  %v2358 = vld [vmem:[%s6 + $0x58] sm:$0xff]
  %v2359 = vld [vmem:[%s6 + $0x60] sm:$0xff]
  %v2360 = vld [vmem:[%s6 + $0x68] sm:$0xff]
  %v2361 = vld [vmem:[%s6 + $0x70] sm:$0xff]
  %v2362 = vld [vmem:[%s6 + $0x78] sm:$0xff]
  %v2363 = vld [vmem:[#allocation3] sm:$0x1]
  %v2365 = vlaneseq
  %v2366 = vshrl.u32 %v2365, 7
  %v2367 = vsub.s32 0, %v2366
  %v2368 = vrot.slane %v2363, %v2367
  %2370 = vmatprep.subr.mxu0 0.0
  %2371 = vmatpush1.msra.mxu0 %v2347
  %2372 = vmatprep.subr.mxu0 0.0
  %2373 = vmatpush1.msra.mxu0 %v2348
  %2374 = vmatprep.subr.mxu0 0.0
  %2375 = vmatpush1.msra.mxu0 %v2349
  %2376 = vmatprep.subr.mxu0 0.0
  %2377 = vmatpush1.msra.mxu0 %v2350
  %2378 = vmatprep.subr.mxu0 0.0
  %2379 = vmatpush1.msra.mxu0 %v2351
  %2380 = vmatprep.subr.mxu0 0.0
  %2381 = vmatpush1.msra.mxu0 %v2352
  %2382 = vmatprep.subr.mxu0 0.0
  %2383 = vmatpush1.msra.mxu0 %v2353
  %2384 = vmatprep.subr.mxu0 0.0
  %2385 = vmatpush1.msra.mxu0 %v2354
  %2386 = vmatprep.subr.mxu0 0.0
  %2387 = vmatpush1.msra.mxu0 %v2355
  %2388 = vmatprep.subr.mxu0 0.0
  %2389 = vmatpush1.msra.mxu0 %v2356
  %2390 = vmatprep.subr.mxu0 0.0
  %2391 = vmatpush1.msra.mxu0 %v2357
  %2392 = vmatprep.subr.mxu0 0.0
  %2393 = vmatpush1.msra.mxu0 %v2358
  %2394 = vmatprep.subr.mxu0 0.0
  %2395 = vmatpush1.msra.mxu0 %v2359
  %2396 = vmatprep.subr.mxu0 0.0
  %2397 = vmatpush1.msra.mxu0 %v2360
  %2398 = vmatprep.subr.mxu0 0.0
  %2399 = vmatpush1.msra.mxu0 %v2361
  %2400 = vmatprep.subr.mxu0 0.0
  %2401 = vmatpush1.msra.mxu0 %v2362
  %2402 = vmatprep.subr.mxu0 0.0
  %2403 = vmatpush1.msra.mxu0 0.0
  %2404 = vmatprep.subr.mxu0 0.0
  %2405 = vmatpush1.msra.mxu0 0.0
  %2406 = vmatprep.subr.mxu0 0.0
  %2407 = vmatpush1.msra.mxu0 0.0
  %2408 = vmatprep.subr.mxu0 0.0
  %2409 = vmatpush1.msra.mxu0 0.0
  %2410 = vmatprep.subr.mxu0 0.0
  %2411 = vmatpush1.msra.mxu0 0.0
  %2412 = vmatprep.subr.mxu0 0.0
  %2413 = vmatpush1.msra.mxu0 0.0
  %2414 = vmatprep.subr.mxu0 0.0
  %2415 = vmatpush1.msra.mxu0 0.0
  %2416 = vmatprep.subr.mxu0 0.0
  %2417 = vmatpush1.msra.mxu0 0.0
  %2418 = vmatprep.subr.mxu0 0.0
  %2419 = vmatpush1.msra.mxu0 0.0
  %2420 = vmatprep.subr.mxu0 0.0
  %2421 = vmatpush1.msra.mxu0 0.0
  %2422 = vmatprep.subr.mxu0 0.0
  %2423 = vmatpush1.msra.mxu0 0.0
  %2424 = vmatprep.subr.mxu0 0.0
  %2425 = vmatpush1.msra.mxu0 0.0
  %2426 = vmatprep.subr.mxu0 0.0
  %2427 = vmatpush1.msra.mxu0 0.0
  %2428 = vmatprep.subr.mxu0 0.0
  %2429 = vmatpush1.msra.mxu0 0.0
  %2430 = vmatprep.subr.mxu0 0.0
  %2431 = vmatpush1.msra.mxu0 0.0
  %2432 = vmatprep.subr.mxu0 0.0
  %2433 = vmatpush1.msra.mxu0 0.0
  %2434 = vmatprep.mubr.f32.mxu0 0.0
  %2435 = vmatmul.mubr.f32.gmra.mrb[0].mxu0 %v2345
  %v2436 = vpop.f32.mrb[0].mxu0
  %v2437 = vadd.f32 %v2368, %v2436
  %v2438 = vpop.f32.mrb[0].mxu0
  %2439 = vmatprep.mubr.f32.mxu0 0.0
  %2440 = vmatmul.mubr.f32.gmra.mrb[0].mxu0 %v2346
  %v2441 = vpop.f32.mrb[0].mxu0
  %v2442 = vadd.f32 %v2368, %v2441
  %v2443 = vpop.f32.mrb[0].mxu0
  %2444 = vdwg.mxu0
  %vm2445 = vcmask 7168
  %2446 = vst.msk [vmem:[%s8] sm:$0xff] %vm2445, %v2437
  %2447 = vst.msk [vmem:[%s8 + $0x8] sm:$0xff] %vm2445, %v2442
  // Predicated region
  $region34: #{tpu_custom_call.1} parent=0 // pred_check
    _
  $region35: #{tpu_custom_call.1} parent=0 // pred_check_branch
    %2449 = sbr.rel (0) target = $region37
  $region36: #{tpu_custom_call.1} parent=0 // pred_region
    _
  $region37: #{tpu_custom_call.1} parent=0 // pred_fallthru
    _
  // Predicated region
  $region38: #{tpu_custom_call.1} parent=0 // pred_check
    _
  $region39: #{tpu_custom_call.1} parent=0 // pred_check_branch
    %2451 = sbr.rel (0) target = $region41
  $region40: #{tpu_custom_call.1} parent=0 // pred_region
    _
  $region41: #{tpu_custom_call.1} parent=0 // pred_fallthru
    _

</llo_original>
